<compile_context>
chip_gen: v7x
topology: tpu7x:2x2x1
jax: 0.10.0
libtpu: 0.0.40
codegen_flags: <defaults>
</compile_context>

<pallas_src>
import functools

import jax
import jax.numpy as jnp
from jax.experimental import pallas as pl
from jax.experimental.pallas import tpu as pltpu


def _round_up(x, m):
    return (x + m - 1) // m * m


# ---------------------------------------------------------------------------
# Fused kernel: conv1 -> chomp -> ReLU -> conv2 -> chomp -> ReLU -> +res -> ReLU
# ---------------------------------------------------------------------------
def _fused_tblock_kernel(has_downsample, K, dilation, pad, halo, tt, *refs):
    if has_downsample:
        (xh_ref, xm_ref, w1_ref, b1_ref, w2_ref, b2_ref,
         wd_ref, bd_ref, o_ref) = refs
    else:
        xh_ref, xm_ref, w1_ref, b1_ref, w2_ref, b2_ref, o_ref = refs
        wd_ref = bd_ref = None

    cout_p = w1_ref.shape[2]

    # Time window for this tile: rows [0, halo) = times [t0-halo, t0),
    # rows [halo, halo+tt) = times [t0, t0+tt).
    xw = jnp.concatenate([xh_ref[0], xm_ref[0]], axis=0)        # (halo+tt, Cin_p)

    # ---- conv1 (dilated, causal) over times [t0-pad, t0+tt) ----------------
    l1 = pad + tt
    acc1 = jnp.zeros((l1, cout_p), jnp.float32)
    for j in range(K):
        shift = (K - 1 - j) * dilation          # tap j reads x[t - shift]
        s = halo - pad - shift                  # static, >= 0 since halo >= 2*pad
        acc1 = acc1 + jnp.dot(xw[s:s + l1, :], w1_ref[j],
                              preferred_element_type=jnp.float32)
    h1 = jnp.maximum(acc1 + b1_ref[...], 0.0)

    # conv2 zero-pads h1 itself: h1 rows whose time < 0 must be exactly 0
    # (not relu(bias)).  Only the first time tile is affected.
    t0 = pl.program_id(1) * tt
    row_t = t0 - pad + jax.lax.broadcasted_iota(jnp.int32, (l1, 1), 0)
    h1 = jnp.where(row_t < 0, 0.0, h1).astype(xw.dtype)

    # ---- conv2 (dilated, causal) over times [t0, t0+tt) --------------------
    acc2 = jnp.zeros((tt, cout_p), jnp.float32)
    for j in range(K):
        shift = (K - 1 - j) * dilation
        s = pad - shift
        acc2 = acc2 + jnp.dot(h1[s:s + tt, :], w2_ref[j],
                              preferred_element_type=jnp.float32)
    y = jnp.maximum(acc2 + b2_ref[...], 0.0)

    # ---- residual + final ReLU ---------------------------------------------
    if has_downsample:
        res = jnp.dot(xm_ref[0], wd_ref[...],
                      preferred_element_type=jnp.float32) + bd_ref[...]
    else:
        res = xm_ref[0].astype(jnp.float32)     # Cin_p == Cout_p, pads are zero
    o_ref[0] = jnp.maximum(y + res, 0.0).astype(o_ref.dtype)


# ---------------------------------------------------------------------------
# Wrapper: layout prep (channels-last, 128-lane channel pad, bf16 cast) + call
# ---------------------------------------------------------------------------
def temporal_block_forward(x_nct, w1, b1, w2, b2, wd, bd, kernel_size, dilation,
                           *, time_tile=512, compute_dtype=jnp.bfloat16,
                           out_dtype=jnp.float32):
    B, Cin, T = x_nct.shape
    Cout = w1.shape[0]
    K = kernel_size
    pad = (K - 1) * dilation

    # Halo covers the 2*pad causal history needed to rebuild h1 locally;
    # round to 16 sublanes so bf16 tiles stay aligned.  Time tile is a
    # multiple of the halo so the halo window is a plain Blocked BlockSpec.
    halo = _round_up(max(2 * pad, 1), 16)
    tt = _round_up(min(time_tile, T), halo)
    t_pad = _round_up(T, tt)
    n_t = t_pad // tt
    stride_h = tt // halo

    cin_p = _round_up(Cin, 128)
    cout_p = _round_up(Cout, 128)

    # Single channels-last, bf16, channel-padded copy of x in HBM.  Front pad
    # of `tt` zero rows both provides the causal history for the first tile
    # and keeps all Blocked offsets integral (tt is a multiple of halo).
    x_btc = jnp.transpose(x_nct, (0, 2, 1))
    x_padded = jnp.pad(x_btc, ((0, 0), (tt, t_pad - T), (0, cin_p - Cin)))
    x_padded = x_padded.astype(compute_dtype)         # [B, tt + t_pad, Cin_p]

    def prep_w(w, cin_pp, cout_pp):
        # PyTorch Conv1d weight [Cout, Cin, K] -> per-tap matmul [K, Cin_p, Cout_p]
        wk = jnp.transpose(w, (2, 1, 0))
        wk = jnp.pad(wk, ((0, 0), (0, cin_pp - wk.shape[1]),
                          (0, cout_pp - wk.shape[2])))
        return wk.astype(compute_dtype)

    w1k = prep_w(w1, cin_p, cout_p)
    w2k = prep_w(w2, cout_p, cout_p)
    b1p = jnp.pad(b1, (0, cout_p - Cout)).astype(jnp.float32).reshape(1, cout_p)
    b2p = jnp.pad(b2, (0, cout_p - Cout)).astype(jnp.float32).reshape(1, cout_p)

    has_ds = wd is not None
    # Same HBM array delivered through two Blocked windows:
    #   halo window: times [t0 - halo, t0)   -> rows [(t+1)*tt - halo, (t+1)*tt)
    #   main window: times [t0, t0 + tt)     -> rows [(t+1)*tt, (t+2)*tt)
    inputs = [x_padded, x_padded, w1k, b1p, w2k, b2p]
    in_specs = [
        pl.BlockSpec((1, halo, cin_p), lambda b, t: (b, (t + 1) * stride_h - 1, 0)),
        pl.BlockSpec((1, tt, cin_p), lambda b, t: (b, t + 1, 0)),
        # weights / biases: constant index map -> stay resident in VMEM
        pl.BlockSpec((K, cin_p, cout_p), lambda b, t: (0, 0, 0)),
        pl.BlockSpec((1, cout_p), lambda b, t: (0, 0)),
        pl.BlockSpec((K, cout_p, cout_p), lambda b, t: (0, 0, 0)),
        pl.BlockSpec((1, cout_p), lambda b, t: (0, 0)),
    ]
    if has_ds:
        wdm = jnp.pad(jnp.transpose(wd[:, :, 0], (1, 0)),
                      ((0, cin_p - Cin), (0, cout_p - Cout))).astype(compute_dtype)
        bdp = jnp.pad(bd, (0, cout_p - Cout)).astype(jnp.float32).reshape(1, cout_p)
        inputs += [wdm, bdp]
        in_specs += [pl.BlockSpec((cin_p, cout_p), lambda b, t: (0, 0)),
                     pl.BlockSpec((1, cout_p), lambda b, t: (0, 0))]

    kernel = functools.partial(_fused_tblock_kernel, has_ds, K, dilation,
                               pad, halo, tt)

    out = pl.pallas_call(
        kernel,
        out_shape=jax.ShapeDtypeStruct((B, t_pad, cout_p), out_dtype),
        grid=(B, n_t),
        in_specs=in_specs,
        out_specs=pl.BlockSpec((1, tt, cout_p), lambda b, t: (b, t, 0)),
        compiler_params=pltpu.CompilerParams(
            dimension_semantics=("parallel", "parallel"),
            vmem_limit_bytes=32 * 1024 * 1024),   # working set << 32 MiB (v7x-safe)
    )(*inputs)

    out = out[:, :T, :Cout]
    return jnp.transpose(out, (0, 2, 1)).astype(jnp.float32)   # back to [B, Cout, T]


# ---------------------------------------------------------------------------
# Helpers + pure-JAX reference for validation
# ---------------------------------------------------------------------------
def weight_norm_weight(v, g):
    # PyTorch weight_norm (dim=0): w = g * v / ||v||_(Cin,K) per out channel
    norm = jnp.sqrt(jnp.sum(v * v, axis=(1, 2), keepdims=True))
    return g[:, None, None] * v / norm


def reference_forward(x, w1, b1, w2, b2, wd, bd, dilation, padding, quant=None):
    cast = (lambda a: a) if quant is None else \
           (lambda a: a.astype(quant).astype(jnp.float32))

    def conv(xx, w, b, d, p):
        y = jax.lax.conv_general_dilated(
            cast(xx), cast(w), window_strides=(1,), padding=[(p, p)],
            rhs_dilation=(d,), dimension_numbers=("NCH", "OIH", "NCH"),
            precision=jax.lax.Precision.HIGHEST)
        return y + b[None, :, None]

    h = conv(x, w1, b1, dilation, padding)
    if padding > 0:
        h = h[:, :, :-padding]
    h = jnp.maximum(h, 0.0)                                   # relu1 (dropout=id)
    h = conv(h, w2, b2, dilation, padding)
    if padding > 0:
        h = h[:, :, :-padding]
    h = jnp.maximum(h, 0.0)                                   # relu2 (dropout=id)
    res = conv(x, wd, bd, 1, 0) if wd is not None else cast(x)
    return jnp.maximum(h + res, 0.0)                          # final relu


# ---------------------------------------------------------------------------
if __name__ == "__main__":
    key = jax.random.PRNGKey(0)

    def run_case(case_key, B, Cin, Cout, T, K, dil, time_tile):
        pad = (K - 1) * dil
        ks = jax.random.split(case_key, 9)
        x = jax.random.normal(ks[0], (B, Cin, T), jnp.float32)

        v1 = jax.random.normal(ks[1], (Cout, Cin, K), jnp.float32)
        g1 = jax.random.uniform(ks[2], (Cout,), jnp.float32, minval=0.5, maxval=1.5)
        b1 = 0.1 * jax.random.normal(ks[3], (Cout,), jnp.float32)
        v2 = jax.random.normal(ks[4], (Cout, Cout, K), jnp.float32)
        g2 = jax.random.uniform(ks[5], (Cout,), jnp.float32, minval=0.5, maxval=1.5)
        b2 = 0.1 * jax.random.normal(ks[6], (Cout,), jnp.float32)
        if Cin != Cout:
            wd = jax.random.normal(ks[7], (Cout, Cin, 1), jnp.float32)
            bd = 0.1 * jax.random.normal(ks[8], (Cout,), jnp.float32)
        else:
            wd, bd = None, None

        w1 = weight_norm_weight(v1, g1)
        w2 = weight_norm_weight(v2, g2)

        out = temporal_block_forward(x, w1, b1, w2, b2, wd, bd, K, dil,
                                     time_tile=time_tile)
        out = jax.block_until_ready(out)
        assert out.shape == (B, Cout, T), out.shape

        # Reference emulating the kernel's numerics (bf16 streamed operands,
        # f32 accumulation), so the comparison is tight.
        ref = reference_forward(x, w1, b1, w2, b2, wd, bd, dil, pad,
                                quant=jnp.bfloat16)
        err = float(jnp.max(jnp.abs(out - ref)))
        assert err < 2e-2, err

    # Case 1: downsample path (Cin != Cout), multiple time tiles -> exercises
    # the cross-tile halo and the t<0 masking of h1.
    run_case(jax.random.fold_in(key, 0), B=2, Cin=4, Cout=8, T=48,
             K=3, dil=2, time_tile=16)
    # Case 2: identity-residual path (Cin == Cout), T not a multiple of the
    # tile -> exercises back-padding of the last tile.
    run_case(jax.random.fold_in(key, 1), B=2, Cin=8, Cout=8, T=40,
             K=2, dil=1, time_tile=16)
    # Case 3: single time tile covering the whole (short) sequence.
    run_case(jax.random.fold_in(key, 2), B=2, Cin=4, Cout=8, T=16,
             K=3, dil=1, time_tile=512)

    print("KERNEL_OK")
</pallas_src>

<mosaic_0001>
module attributes {stable_mosaic.version = 11 : i64} {
  func.func @_fused_tblock_kernel(%arg0: i32, %arg1: i32, %arg2: memref<1x16x128xbf16, #tpu.memory_space<vmem>>, %arg3: memref<1x16x128xbf16, #tpu.memory_space<vmem>>, %arg4: memref<3x128x128xbf16, #tpu.memory_space<vmem>>, %arg5: memref<1x128xf32, #tpu.memory_space<vmem>>, %arg6: memref<3x128x128xbf16, #tpu.memory_space<vmem>>, %arg7: memref<1x128xf32, #tpu.memory_space<vmem>>, %arg8: memref<128x128xbf16, #tpu.memory_space<vmem>>, %arg9: memref<1x128xf32, #tpu.memory_space<vmem>>, %arg10: memref<1x16x128xf32, #tpu.memory_space<vmem>>) attributes {dimension_semantics = [#tpu.dimension_semantics<parallel>, #tpu.dimension_semantics<parallel>], iteration_bounds = array<i64: 2, 3>, scalar_prefetch = 0 : i64, scratch_operands = 0 : i64, tpu.core_type = #tpu.core_type<tc>, window_params = [{transform_indices = @transform_0, window_bounds = array<i64: 1, 16, 128>}, {transform_indices = @transform_1, window_bounds = array<i64: 1, 16, 128>}, {pipeline_mode = #tpu.pipeline_mode<synchronous>, transform_indices = @transform_2, window_bounds = array<i64: 3, 128, 128>}, {pipeline_mode = #tpu.pipeline_mode<synchronous>, transform_indices = @transform_3, window_bounds = array<i64: 1, 128>}, {pipeline_mode = #tpu.pipeline_mode<synchronous>, transform_indices = @transform_4, window_bounds = array<i64: 3, 128, 128>}, {pipeline_mode = #tpu.pipeline_mode<synchronous>, transform_indices = @transform_5, window_bounds = array<i64: 1, 128>}, {pipeline_mode = #tpu.pipeline_mode<synchronous>, transform_indices = @transform_6, window_bounds = array<i64: 128, 128>}, {pipeline_mode = #tpu.pipeline_mode<synchronous>, transform_indices = @transform_7, window_bounds = array<i64: 1, 128>}, {transform_indices = @transform_8, window_bounds = array<i64: 1, 16, 128>}]} {
    %c0 = arith.constant 0 : index
    %c0_0 = arith.constant 0 : index
    %c0_1 = arith.constant 0 : index
    %0 = vector.load %arg2[%c0, %c0_0, %c0_1] : memref<1x16x128xbf16, #tpu.memory_space<vmem>>, vector<1x16x128xbf16>
    %1 = vector.shape_cast %0 : vector<1x16x128xbf16> to vector<16x128xbf16>
    %c0_2 = arith.constant 0 : index
    %c0_3 = arith.constant 0 : index
    %c0_4 = arith.constant 0 : index
    %2 = vector.load %arg3[%c0_2, %c0_3, %c0_4] : memref<1x16x128xbf16, #tpu.memory_space<vmem>>, vector<1x16x128xbf16>
    %3 = vector.shape_cast %2 : vector<1x16x128xbf16> to vector<16x128xbf16>
    %4 = tpu.concatenate %1, %3 in 0 : vector<16x128xbf16>, vector<16x128xbf16> -> vector<32x128xbf16>
    %cst = arith.constant 0.000000e+00 : f32
    %5 = vector.broadcast %cst : f32 to vector<20x128xf32>
    %6 = vector.extract_strided_slice %4 {offsets = [8, 0], sizes = [20, 128], strides = [1, 1]} : vector<32x128xbf16> to vector<20x128xbf16>
    %c0_5 = arith.constant 0 : index
    %c0_6 = arith.constant 0 : index
    %c0_7 = arith.constant 0 : index
    %7 = vector.load %arg4[%c0_5, %c0_6, %c0_7] : memref<3x128x128xbf16, #tpu.memory_space<vmem>>, vector<1x128x128xbf16>
    %8 = vector.shape_cast %7 : vector<1x128x128xbf16> to vector<128x128xbf16>
    %cst_8 = arith.constant dense<0.000000e+00> : vector<20x128xf32>
    %9 = tpu.matmul %6, %8, %cst_8 {dimension_numbers = #tpu.dot_dimension_numbers<[1], [0], [0], [1], [0, 0, 1, 1], [], []>} : vector<20x128xbf16>, vector<128x128xbf16>, vector<20x128xf32> -> vector<20x128xf32>
    %10 = arith.addf %5, %9 : vector<20x128xf32>
    %11 = vector.extract_strided_slice %4 {offsets = [10, 0], sizes = [20, 128], strides = [1, 1]} : vector<32x128xbf16> to vector<20x128xbf16>
    %c1 = arith.constant 1 : index
    %c0_9 = arith.constant 0 : index
    %c0_10 = arith.constant 0 : index
    %12 = vector.load %arg4[%c1, %c0_9, %c0_10] : memref<3x128x128xbf16, #tpu.memory_space<vmem>>, vector<1x128x128xbf16>
    %13 = vector.shape_cast %12 : vector<1x128x128xbf16> to vector<128x128xbf16>
    %cst_11 = arith.constant dense<0.000000e+00> : vector<20x128xf32>
    %14 = tpu.matmul %11, %13, %cst_11 {dimension_numbers = #tpu.dot_dimension_numbers<[1], [0], [0], [1], [0, 0, 1, 1], [], []>} : vector<20x128xbf16>, vector<128x128xbf16>, vector<20x128xf32> -> vector<20x128xf32>
    %15 = arith.addf %10, %14 : vector<20x128xf32>
    %16 = vector.extract_strided_slice %4 {offsets = [12, 0], sizes = [20, 128], strides = [1, 1]} : vector<32x128xbf16> to vector<20x128xbf16>
    %c2 = arith.constant 2 : index
    %c0_12 = arith.constant 0 : index
    %c0_13 = arith.constant 0 : index
    %17 = vector.load %arg4[%c2, %c0_12, %c0_13] : memref<3x128x128xbf16, #tpu.memory_space<vmem>>, vector<1x128x128xbf16>
    %18 = vector.shape_cast %17 : vector<1x128x128xbf16> to vector<128x128xbf16>
    %cst_14 = arith.constant dense<0.000000e+00> : vector<20x128xf32>
    %19 = tpu.matmul %16, %18, %cst_14 {dimension_numbers = #tpu.dot_dimension_numbers<[1], [0], [0], [1], [0, 0, 1, 1], [], []>} : vector<20x128xbf16>, vector<128x128xbf16>, vector<20x128xf32> -> vector<20x128xf32>
    %20 = arith.addf %15, %19 : vector<20x128xf32>
    %c0_15 = arith.constant 0 : index
    %c0_16 = arith.constant 0 : index
    %21 = vector.load %arg5[%c0_15, %c0_16] : memref<1x128xf32, #tpu.memory_space<vmem>>, vector<1x128xf32>
    %22 = vector.broadcast %21 : vector<1x128xf32> to vector<20x128xf32>
    %23 = arith.addf %20, %22 : vector<20x128xf32>
    %cst_17 = arith.constant 0.000000e+00 : f32
    %24 = vector.broadcast %cst_17 : f32 to vector<20x128xf32>
    %25 = arith.maximumf %23, %24 : vector<20x128xf32>
    %c16_i32 = arith.constant 16 : i32
    %26 = arith.muli %arg1, %c16_i32 : i32
    %c4_i32 = arith.constant 4 : i32
    %27 = arith.subi %26, %c4_i32 : i32
    %28 = tpu.iota {dimensions = array<i32: 0>} : vector<20x1xi32>
    %29 = vector.broadcast %27 : i32 to vector<20x1xi32>
    %30 = arith.addi %29, %28 : vector<20x1xi32>
    %c0_i32 = arith.constant 0 : i32
    %31 = vector.broadcast %c0_i32 : i32 to vector<20x1xi32>
    %32 = arith.cmpi slt, %30, %31 : vector<20x1xi32>
    %cst_18 = arith.constant 0.000000e+00 : f32
    %33 = vector.shape_cast %32 : vector<20x1xi1> to vector<20x1xi1>
    %34 = vector.broadcast %33 : vector<20x1xi1> to vector<20x128xi1>
    %35 = vector.broadcast %cst_18 : f32 to vector<20x128xf32>
    %36 = arith.select %34, %35, %25 : vector<20x128xi1>, vector<20x128xf32>
    %37 = arith.truncf %36 : vector<20x128xf32> to vector<20x128xbf16>
    %cst_19 = arith.constant 0.000000e+00 : f32
    %38 = vector.broadcast %cst_19 : f32 to vector<16x128xf32>
    %39 = vector.extract_strided_slice %37 {offsets = [0, 0], sizes = [16, 128], strides = [1, 1]} : vector<20x128xbf16> to vector<16x128xbf16>
    %c0_20 = arith.constant 0 : index
    %c0_21 = arith.constant 0 : index
    %c0_22 = arith.constant 0 : index
    %40 = vector.load %arg6[%c0_20, %c0_21, %c0_22] : memref<3x128x128xbf16, #tpu.memory_space<vmem>>, vector<1x128x128xbf16>
    %41 = vector.shape_cast %40 : vector<1x128x128xbf16> to vector<128x128xbf16>
    %cst_23 = arith.constant dense<0.000000e+00> : vector<16x128xf32>
    %42 = tpu.matmul %39, %41, %cst_23 {dimension_numbers = #tpu.dot_dimension_numbers<[1], [0], [0], [1], [0, 0, 1, 1], [], []>} : vector<16x128xbf16>, vector<128x128xbf16>, vector<16x128xf32> -> vector<16x128xf32>
    %43 = arith.addf %38, %42 : vector<16x128xf32>
    %44 = vector.extract_strided_slice %37 {offsets = [2, 0], sizes = [16, 128], strides = [1, 1]} : vector<20x128xbf16> to vector<16x128xbf16>
    %c1_24 = arith.constant 1 : index
    %c0_25 = arith.constant 0 : index
    %c0_26 = arith.constant 0 : index
    %45 = vector.load %arg6[%c1_24, %c0_25, %c0_26] : memref<3x128x128xbf16, #tpu.memory_space<vmem>>, vector<1x128x128xbf16>
    %46 = vector.shape_cast %45 : vector<1x128x128xbf16> to vector<128x128xbf16>
    %cst_27 = arith.constant dense<0.000000e+00> : vector<16x128xf32>
    %47 = tpu.matmul %44, %46, %cst_27 {dimension_numbers = #tpu.dot_dimension_numbers<[1], [0], [0], [1], [0, 0, 1, 1], [], []>} : vector<16x128xbf16>, vector<128x128xbf16>, vector<16x128xf32> -> vector<16x128xf32>
    %48 = arith.addf %43, %47 : vector<16x128xf32>
    %49 = vector.extract_strided_slice %37 {offsets = [4, 0], sizes = [16, 128], strides = [1, 1]} : vector<20x128xbf16> to vector<16x128xbf16>
    %c2_28 = arith.constant 2 : index
    %c0_29 = arith.constant 0 : index
    %c0_30 = arith.constant 0 : index
    %50 = vector.load %arg6[%c2_28, %c0_29, %c0_30] : memref<3x128x128xbf16, #tpu.memory_space<vmem>>, vector<1x128x128xbf16>
    %51 = vector.shape_cast %50 : vector<1x128x128xbf16> to vector<128x128xbf16>
    %cst_31 = arith.constant dense<0.000000e+00> : vector<16x128xf32>
    %52 = tpu.matmul %49, %51, %cst_31 {dimension_numbers = #tpu.dot_dimension_numbers<[1], [0], [0], [1], [0, 0, 1, 1], [], []>} : vector<16x128xbf16>, vector<128x128xbf16>, vector<16x128xf32> -> vector<16x128xf32>
    %53 = arith.addf %48, %52 : vector<16x128xf32>
    %c0_32 = arith.constant 0 : index
    %c0_33 = arith.constant 0 : index
    %54 = vector.load %arg7[%c0_32, %c0_33] : memref<1x128xf32, #tpu.memory_space<vmem>>, vector<1x128xf32>
    %55 = vector.broadcast %54 : vector<1x128xf32> to vector<16x128xf32>
    %56 = arith.addf %53, %55 : vector<16x128xf32>
    %cst_34 = arith.constant 0.000000e+00 : f32
    %57 = vector.broadcast %cst_34 : f32 to vector<16x128xf32>
    %58 = arith.maximumf %56, %57 : vector<16x128xf32>
    %c0_35 = arith.constant 0 : index
    %c0_36 = arith.constant 0 : index
    %c0_37 = arith.constant 0 : index
    %59 = vector.load %arg3[%c0_35, %c0_36, %c0_37] : memref<1x16x128xbf16, #tpu.memory_space<vmem>>, vector<1x16x128xbf16>
    %60 = vector.shape_cast %59 : vector<1x16x128xbf16> to vector<16x128xbf16>
    %c0_38 = arith.constant 0 : index
    %c0_39 = arith.constant 0 : index
    %61 = vector.load %arg8[%c0_38, %c0_39] : memref<128x128xbf16, #tpu.memory_space<vmem>>, vector<128x128xbf16>
    %cst_40 = arith.constant dense<0.000000e+00> : vector<16x128xf32>
    %62 = tpu.matmul %60, %61, %cst_40 {dimension_numbers = #tpu.dot_dimension_numbers<[1], [0], [0], [1], [0, 0, 1, 1], [], []>} : vector<16x128xbf16>, vector<128x128xbf16>, vector<16x128xf32> -> vector<16x128xf32>
    %c0_41 = arith.constant 0 : index
    %c0_42 = arith.constant 0 : index
    %63 = vector.load %arg9[%c0_41, %c0_42] : memref<1x128xf32, #tpu.memory_space<vmem>>, vector<1x128xf32>
    %64 = vector.broadcast %63 : vector<1x128xf32> to vector<16x128xf32>
    %65 = arith.addf %62, %64 : vector<16x128xf32>
    %66 = arith.addf %58, %65 : vector<16x128xf32>
    %cst_43 = arith.constant 0.000000e+00 : f32
    %67 = vector.broadcast %cst_43 : f32 to vector<16x128xf32>
    %68 = arith.maximumf %66, %67 : vector<16x128xf32>
    %c0_44 = arith.constant 0 : index
    %c0_45 = arith.constant 0 : index
    %c0_46 = arith.constant 0 : index
    %69 = vector.load %arg10[%c0_44, %c0_45, %c0_46] : memref<1x16x128xf32, #tpu.memory_space<vmem>>, vector<1x16x128xf32>
    %70 = vector.shape_cast %69 : vector<1x16x128xf32> to vector<16x128xf32>
    %71 = vector.shape_cast %68 : vector<16x128xf32> to vector<1x16x128xf32>
    tpu.vector_store %arg10[%c0_44, %c0_45, %c0_46], %71 {strides = array<i32>} : memref<1x16x128xf32, #tpu.memory_space<vmem>>, vector<1x16x128xf32>,
    return
  }
  func.func @transform_0(%arg0: i32, %arg1: i32) -> (i32, i32, i32) {
    %c1_i32 = arith.constant 1 : i32
    %0 = arith.addi %arg1, %c1_i32 : i32
    %c1_i32_0 = arith.constant 1 : i32
    %1 = arith.muli %0, %c1_i32_0 : i32
    %c1_i32_1 = arith.constant 1 : i32
    %2 = arith.subi %1, %c1_i32_1 : i32
    %c0_i32 = arith.constant 0 : i32
    %c0_i32_2 = arith.constant 0 : i32
    return %arg0, %2, %c0_i32 : i32, i32, i32
  }
  func.func @transform_1(%arg0: i32, %arg1: i32) -> (i32, i32, i32) {
    %c1_i32 = arith.constant 1 : i32
    %0 = arith.addi %arg1, %c1_i32 : i32
    %c0_i32 = arith.constant 0 : i32
    %c0_i32_0 = arith.constant 0 : i32
    return %arg0, %0, %c0_i32 : i32, i32, i32
  }
  func.func @transform_2(%arg0: i32, %arg1: i32) -> (i32, i32, i32) {
    %c0_i32 = arith.constant 0 : i32
    %c0_i32_0 = arith.constant 0 : i32
    %c0_i32_1 = arith.constant 0 : i32
    %c0_i32_2 = arith.constant 0 : i32
    return %c0_i32, %c0_i32_0, %c0_i32_1 : i32, i32, i32
  }
  func.func @transform_3(%arg0: i32, %arg1: i32) -> (i32, i32) {
    %c0_i32 = arith.constant 0 : i32
    %c0_i32_0 = arith.constant 0 : i32
    %c0_i32_1 = arith.constant 0 : i32
    return %c0_i32, %c0_i32_0 : i32, i32
  }
  func.func @transform_4(%arg0: i32, %arg1: i32) -> (i32, i32, i32) {
    %c0_i32 = arith.constant 0 : i32
    %c0_i32_0 = arith.constant 0 : i32
    %c0_i32_1 = arith.constant 0 : i32
    %c0_i32_2 = arith.constant 0 : i32
    return %c0_i32, %c0_i32_0, %c0_i32_1 : i32, i32, i32
  }
  func.func @transform_5(%arg0: i32, %arg1: i32) -> (i32, i32) {
    %c0_i32 = arith.constant 0 : i32
    %c0_i32_0 = arith.constant 0 : i32
    %c0_i32_1 = arith.constant 0 : i32
    return %c0_i32, %c0_i32_0 : i32, i32
  }
  func.func @transform_6(%arg0: i32, %arg1: i32) -> (i32, i32) {
    %c0_i32 = arith.constant 0 : i32
    %c0_i32_0 = arith.constant 0 : i32
    %c0_i32_1 = arith.constant 0 : i32
    return %c0_i32, %c0_i32_0 : i32, i32
  }
  func.func @transform_7(%arg0: i32, %arg1: i32) -> (i32, i32) {
    %c0_i32 = arith.constant 0 : i32
    %c0_i32_0 = arith.constant 0 : i32
    %c0_i32_1 = arith.constant 0 : i32
    return %c0_i32, %c0_i32_0 : i32, i32
  }
  func.func @transform_8(%arg0: i32, %arg1: i32) -> (i32, i32, i32) {
    %c0_i32 = arith.constant 0 : i32
    %c0_i32_0 = arith.constant 0 : i32
    return %arg0, %arg1, %c0_i32 : i32, i32, i32
  }
}

</mosaic_0001>

<llo_original>
// kernel: tpu_custom_call.1
$region0: #{tpu_custom_call.1}
  #allocation0 [shape = 'u32[]', space=smem, size = 0x4, offset = 0x4, fixed_abs, tag = 'smem constant byte address 0x4 - core index']
  #allocation1 [shape = 'u32[144,128]{1,0:T(1,128)}', space=vmem, size = 0x12000, scoped, tag = 'internal scratch']
  %s0 = inlined_call_operand.hbm [shape: bf16[2,64,128], index: 0, kind: input, shape index: {}]
  %s1 = inlined_call_operand.hbm [shape: bf16[2,64,128], index: 1, kind: input, shape index: {}]
  %s2 = inlined_call_operand.hbm [shape: bf16[3,128,128], index: 2, kind: input, shape index: {}]
  %s3 = inlined_call_operand.vmem [shape: f32[1,128], index: 3, kind: input, shape index: {}]
  %s4 = inlined_call_operand.hbm [shape: bf16[3,128,128], index: 4, kind: input, shape index: {}]
  %s5 = inlined_call_operand.vmem [shape: f32[1,128], index: 5, kind: input, shape index: {}]
  %s6 = inlined_call_operand.hbm [shape: bf16[128,128], index: 6, kind: input, shape index: {}]
  %s7 = inlined_call_operand.vmem [shape: f32[1,128], index: 7, kind: input, shape index: {}]
  %s8 = inlined_call_operand.hbm [shape: f32[2,48,128], index: 8, kind: output, shape index: {}]
  %s9 = sld [smem:[#allocation0]]
  $region85: #{tpu_custom_call.1} parent=0
    _
  %s11 = ssub.s32 1, %s9
  %s12 = scalar_select 0, %s11, %s9
  $region1: #{tpu_custom_call.1} parent=0
    #allocation2 [shape = 'u8[8192]{0}', space=vmem, size = 0x2000, scoped, tag = 'input window, operand 0']
    #allocation3 [shape = 's32[2]{0}', space=sflag, size = 0x8, scoped, tag = 'scoped memory for tpu_custom_call.1']
    #allocation4 [shape = 's32[2]{0}', space=sflag, size = 0x8, scoped, tag = 'scoped memory for tpu_custom_call.1']
    #allocation5 [shape = 'u8[8192]{0}', space=vmem, size = 0x2000, scoped, tag = 'input window, operand 1']
    #allocation6 [shape = 's32[2]{0}', space=sflag, size = 0x8, scoped, tag = 'scoped memory for tpu_custom_call.1']
    #allocation7 [shape = 'u8[98304]{0}', space=vmem, size = 0x18000, scoped, tag = 'input window, operand 2, single buffered']
    #allocation8 [shape = 'u8[98304]{0}', space=vmem, size = 0x18000, scoped, tag = 'input window, operand 4, single buffered']
    #allocation9 [shape = 's32[1]{0}', space=sflag, size = 0x4, scoped, tag = 'scoped memory for tpu_custom_call.1']
    #allocation10 [shape = 'u8[32768]{0}', space=vmem, size = 0x8000, scoped, tag = 'input window, operand 6, single buffered']
    #allocation11 [shape = 'u8[16384]{0}', space=vmem, size = 0x4000, scoped, tag = 'output window, operand 0']
    %13 = vsyncpa [#allocation3], 0
    %s14 = scalar_lea.sflag [#allocation3], 1
    %15 = vsyncpa %s14, 0
    %16 = vsyncpa [#allocation6], 0
    %s17 = scalar_lea.sflag [#allocation6], 1
    %18 = vsyncpa %s17, 0
    %19 = vsyncpa [#allocation9], 0
    %20 = vsyncpa [#allocation4], 0
    %s21 = scalar_lea.sflag [#allocation4], 1
    %22 = vsyncpa %s21, 0
    loop: start=0, step=1, limit=8
    $region2: #{tpu_custom_call.1} parent=1 // loop_pre_header
      _
    $region3: #{tpu_custom_call.1} parent=1 // loop_header
      %s24 = sphi 0, %s28
      %p25 = scmp.ge.s32.totalorder %s24, 8
      %s31 = sphi 0, %s43
      %s32 = sphi 0, %s39
      %s33 = sphi 0, %s31
      %s34 = sphi 0, %s32
      %s35 = sphi 0, %s33
      %s36 = sphi 0, %s34
      %s48 = sphi 0, %s50
      %s51 = sphi 0, %s48
      %s52 = sphi 0, %s51
      %s68 = sphi 0, %s52
      %s78 = sphi 0, %s80
      %s81 = sphi 0, %s78
      %s82 = sphi 0, %s81
      %s98 = sphi 0, %s82
      %s102 = sphi 0, %s102
      %s104 = sphi 0, %s102
      %s105 = sphi 0, %s104
      %s119 = sphi 0, %s105
      %s123 = sphi 0, %s123
      %s125 = sphi 0, %s123
      %s126 = sphi 0, %s125
      %s140 = sphi 0, %s126
      %s144 = sphi 0, %s144
      %s146 = sphi 0, %s144
      %s147 = sphi 0, %s146
      %s161 = sphi 0, %s147
      %s165 = sphi 0, %s165
      %s167 = sphi 0, %s165
      %s168 = sphi 0, %s167
      %s182 = sphi 0, %s168
      %s186 = sphi 0, %s186
      %s188 = sphi 0, %s186
      %s189 = sphi 0, %s188
      %s203 = sphi 0, %s189
      %s207 = sphi 0, %s207
      %s209 = sphi 0, %s207
      %s210 = sphi 0, %s209
      %s224 = sphi 0, %s210
      %s232 = sphi 0, %s234
      %s235 = sphi 0, %s232
      %s236 = sphi 0, %s235
      %s252 = sphi 0, %s236
    $region4: #{tpu_custom_call.1} parent=1 // loop_header_branch
      %27 = sbr.rel (%p25) target = $region8
    $region5: #{tpu_custom_call.1} parent=1 // loop_body
      %s29 = ssub.s32 %s24, 1
      %s30 = ssub.s32 %s24, 2
      %s37 = sadd.s32 1, %s32
      %p38 = scmp.ge.s32.totalorder %s37, 3
      %s39 = scalar_select %p38, 0, %s37
      %s40 = sadd.s32 1, %s31
      %s41 = scalar_select %p38, %s40, %s31
      %p42 = scmp.ge.s32.totalorder %s41, 2
      %s43 = scalar_select %p42, 0, %s41
      %s44 = ssub.s32 %s31, %s43
      %s45 = ssub.s32 %s32, %s39
      %s46 = sor.u32 %s44, %s45
      %p47 = scmp.eq.s32.totalorder %s46, 0
      %s49 = sadd.s32 %s48, 1
      %s50 = scalar_select %p47, %s48, %s49
      %p53 = pneg %p47
      %p54 = scmp.eq.s32.totalorder %s24, 5
      %p55 = por %p53, %p54
      %p56 = scmp.ne.s32.totalorder %s48, %s51
      %p57 = scmp.eq.s32.totalorder %s24, 0
      %p58 = por %p56, %p57
      %p59 = scmp.ne.s32.totalorder %s48, %s51
      %p60 = scmp.eq.s32.totalorder %s29, 5
      %p61 = por %p59, %p60
      %p62 = scmp.ne.s32.totalorder %s51, %s52
      %p63 = scmp.eq.s32.totalorder %s29, 0
      %p64 = por %p62, %p63
      %p65 = scmp.ne.s32.totalorder %s51, %s52
      %p66 = scmp.eq.s32.totalorder %s30, 5
      %p67 = por %p65, %p66
      %p69 = scmp.ne.s32.totalorder %s52, %s68
      %p70 = scmp.eq.s32.totalorder %s30, 0
      %p71 = por %p69, %p70
      %s72 = sadd.s32 %s32, 1
      %s73 = sadd.s32 %s39, 1
      %s74 = ssub.s32 %s31, %s43
      %s75 = ssub.s32 %s72, %s73
      %s76 = sor.u32 %s74, %s75
      %p77 = scmp.eq.s32.totalorder %s76, 0
      %s79 = sadd.s32 %s78, 1
      %s80 = scalar_select %p77, %s78, %s79
      %p83 = pneg %p77
      %p84 = scmp.eq.s32.totalorder %s24, 5
      %p85 = por %p83, %p84
      %p86 = scmp.ne.s32.totalorder %s78, %s81
      %p87 = scmp.eq.s32.totalorder %s24, 0
      %p88 = por %p86, %p87
      %p89 = scmp.ne.s32.totalorder %s78, %s81
      %p90 = scmp.eq.s32.totalorder %s29, 5
      %p91 = por %p89, %p90
      %p92 = scmp.ne.s32.totalorder %s81, %s82
      %p93 = scmp.eq.s32.totalorder %s29, 0
      %p94 = por %p92, %p93
      %p95 = scmp.ne.s32.totalorder %s81, %s82
      %p96 = scmp.eq.s32.totalorder %s30, 5
      %p97 = por %p95, %p96
      %p99 = scmp.ne.s32.totalorder %s82, %s98
      %p100 = scmp.eq.s32.totalorder %s30, 0
      %p101 = por %p99, %p100
      %s103 = sadd.s32 %s102, 1
      %p106 = scmp.eq.s32.totalorder %s24, 5
      %p107 = scmp.ne.s32.totalorder %s102, %s104
      %p108 = scmp.eq.s32.totalorder %s24, 0
      %p109 = por %p107, %p108
      %p110 = scmp.ne.s32.totalorder %s102, %s104
      %p111 = scmp.eq.s32.totalorder %s29, 5
      %p112 = por %p110, %p111
      %p113 = scmp.ne.s32.totalorder %s104, %s105
      %p114 = scmp.eq.s32.totalorder %s29, 0
      %p115 = por %p113, %p114
      %p116 = scmp.ne.s32.totalorder %s104, %s105
      %p117 = scmp.eq.s32.totalorder %s30, 5
      %p118 = por %p116, %p117
      %p120 = scmp.ne.s32.totalorder %s105, %s119
      %p121 = scmp.eq.s32.totalorder %s30, 0
      %p122 = por %p120, %p121
      %s124 = sadd.s32 %s123, 1
      %p127 = scmp.eq.s32.totalorder %s24, 5
      %p128 = scmp.ne.s32.totalorder %s123, %s125
      %p129 = scmp.eq.s32.totalorder %s24, 0
      %p130 = por %p128, %p129
      %p131 = scmp.ne.s32.totalorder %s123, %s125
      %p132 = scmp.eq.s32.totalorder %s29, 5
      %p133 = por %p131, %p132
      %p134 = scmp.ne.s32.totalorder %s125, %s126
      %p135 = scmp.eq.s32.totalorder %s29, 0
      %p136 = por %p134, %p135
      %p137 = scmp.ne.s32.totalorder %s125, %s126
      %p138 = scmp.eq.s32.totalorder %s30, 5
      %p139 = por %p137, %p138
      %p141 = scmp.ne.s32.totalorder %s126, %s140
      %p142 = scmp.eq.s32.totalorder %s30, 0
      %p143 = por %p141, %p142
      %s145 = sadd.s32 %s144, 1
      %p148 = scmp.eq.s32.totalorder %s24, 5
      %p149 = scmp.ne.s32.totalorder %s144, %s146
      %p150 = scmp.eq.s32.totalorder %s24, 0
      %p151 = por %p149, %p150
      %p152 = scmp.ne.s32.totalorder %s144, %s146
      %p153 = scmp.eq.s32.totalorder %s29, 5
      %p154 = por %p152, %p153
      %p155 = scmp.ne.s32.totalorder %s146, %s147
      %p156 = scmp.eq.s32.totalorder %s29, 0
      %p157 = por %p155, %p156
      %p158 = scmp.ne.s32.totalorder %s146, %s147
      %p159 = scmp.eq.s32.totalorder %s30, 5
      %p160 = por %p158, %p159
      %p162 = scmp.ne.s32.totalorder %s147, %s161
      %p163 = scmp.eq.s32.totalorder %s30, 0
      %p164 = por %p162, %p163
      %s166 = sadd.s32 %s165, 1
      %p169 = scmp.eq.s32.totalorder %s24, 5
      %p170 = scmp.ne.s32.totalorder %s165, %s167
      %p171 = scmp.eq.s32.totalorder %s24, 0
      %p172 = por %p170, %p171
      %p173 = scmp.ne.s32.totalorder %s165, %s167
      %p174 = scmp.eq.s32.totalorder %s29, 5
      %p175 = por %p173, %p174
      %p176 = scmp.ne.s32.totalorder %s167, %s168
      %p177 = scmp.eq.s32.totalorder %s29, 0
      %p178 = por %p176, %p177
      %p179 = scmp.ne.s32.totalorder %s167, %s168
      %p180 = scmp.eq.s32.totalorder %s30, 5
      %p181 = por %p179, %p180
      %p183 = scmp.ne.s32.totalorder %s168, %s182
      %p184 = scmp.eq.s32.totalorder %s30, 0
      %p185 = por %p183, %p184
      %s187 = sadd.s32 %s186, 1
      %p190 = scmp.eq.s32.totalorder %s24, 5
      %p191 = scmp.ne.s32.totalorder %s186, %s188
      %p192 = scmp.eq.s32.totalorder %s24, 0
      %p193 = por %p191, %p192
      %p194 = scmp.ne.s32.totalorder %s186, %s188
      %p195 = scmp.eq.s32.totalorder %s29, 5
      %p196 = por %p194, %p195
      %p197 = scmp.ne.s32.totalorder %s188, %s189
      %p198 = scmp.eq.s32.totalorder %s29, 0
      %p199 = por %p197, %p198
      %p200 = scmp.ne.s32.totalorder %s188, %s189
      %p201 = scmp.eq.s32.totalorder %s30, 5
      %p202 = por %p200, %p201
      %p204 = scmp.ne.s32.totalorder %s189, %s203
      %p205 = scmp.eq.s32.totalorder %s30, 0
      %p206 = por %p204, %p205
      %s208 = sadd.s32 %s207, 1
      %p211 = scmp.eq.s32.totalorder %s24, 5
      %p212 = scmp.ne.s32.totalorder %s207, %s209
      %p213 = scmp.eq.s32.totalorder %s24, 0
      %p214 = por %p212, %p213
      %p215 = scmp.ne.s32.totalorder %s207, %s209
      %p216 = scmp.eq.s32.totalorder %s29, 5
      %p217 = por %p215, %p216
      %p218 = scmp.ne.s32.totalorder %s209, %s210
      %p219 = scmp.eq.s32.totalorder %s29, 0
      %p220 = por %p218, %p219
      %p221 = scmp.ne.s32.totalorder %s209, %s210
      %p222 = scmp.eq.s32.totalorder %s30, 5
      %p223 = por %p221, %p222
      %p225 = scmp.ne.s32.totalorder %s210, %s224
      %p226 = scmp.eq.s32.totalorder %s30, 0
      %p227 = por %p225, %p226
      %s228 = ssub.s32 %s31, %s43
      %s229 = ssub.s32 %s32, %s39
      %s230 = sor.u32 %s228, %s229
      %p231 = scmp.eq.s32.totalorder %s230, 0
      %s233 = sadd.s32 %s232, 1
      %s234 = scalar_select %p231, %s232, %s233
      %p237 = pneg %p231
      %p238 = scmp.eq.s32.totalorder %s24, 5
      %p239 = por %p237, %p238
      %p240 = scmp.ne.s32.totalorder %s232, %s235
      %p241 = scmp.eq.s32.totalorder %s24, 0
      %p242 = por %p240, %p241
      %p243 = scmp.ne.s32.totalorder %s232, %s235
      %p244 = scmp.eq.s32.totalorder %s29, 5
      %p245 = por %p243, %p244
      %p246 = scmp.ne.s32.totalorder %s235, %s236
      %p247 = scmp.eq.s32.totalorder %s29, 0
      %p248 = por %p246, %p247
      %p249 = scmp.ne.s32.totalorder %s235, %s236
      %p250 = scmp.eq.s32.totalorder %s30, 5
      %p251 = por %p249, %p250
      %p253 = scmp.ne.s32.totalorder %s236, %s252
      %p254 = scmp.eq.s32.totalorder %s30, 0
      %p255 = por %p253, %p254
      %p256 = scmp.le.s32.totalorder 1, %s24
      %p257 = scmp.lt.s32.totalorder %s24, 7
      %p258 = pnand %p256, %p257
      %p259 = pneg %p258
      // Predicated region
      $region9: #{tpu_custom_call.1} parent=5 // pred_check
        _
      $region10: #{tpu_custom_call.1} parent=5 // pred_check_branch
        %261 = sbr.rel (%p258) target = $region12
      $region11: #{tpu_custom_call.1} parent=5 // pred_region
        %s262 = ssub.s32 %s24, 1
        // Predicated region
        $region13: #{tpu_custom_call.1} parent=11 // pred_check
          %p263 = pneg %p115
        $region14: #{tpu_custom_call.1} parent=11 // pred_check_branch
          %265 = sbr.rel (%p263) target = $region16
        $region15: #{tpu_custom_call.1} parent=11 // pred_region
          %s267 = ssub.s32 3072, 3072
          %268 = vsyncadd [#allocation6], %s267
          %s269 = sshll.u32 [#allocation7], 4
          %s270 = int_to_ptr.vmem [resolvable:$true] %s269
          %275 = dma.hbm_to_vmem [thread:$0]  %s2, 3072, %s270, [#allocation6], 64, 64, 4
        $region16: #{tpu_custom_call.1} parent=11 // pred_fallthru
          _
        // Predicated region
        $region17: #{tpu_custom_call.1} parent=11 // pred_check
          %p276 = pneg %p136
        $region18: #{tpu_custom_call.1} parent=11 // pred_check_branch
          %278 = sbr.rel (%p276) target = $region20
        $region19: #{tpu_custom_call.1} parent=11 // pred_region
          _
        $region20: #{tpu_custom_call.1} parent=11 // pred_fallthru
          _
        // Predicated region
        $region21: #{tpu_custom_call.1} parent=11 // pred_check
          %p279 = pneg %p157
        $region22: #{tpu_custom_call.1} parent=11 // pred_check_branch
          %281 = sbr.rel (%p279) target = $region24
        $region23: #{tpu_custom_call.1} parent=11 // pred_region
          %s283 = ssub.s32 3072, 3072
          %284 = vsyncadd [#allocation9], %s283
          %s285 = sshll.u32 [#allocation8], 4
          %s286 = int_to_ptr.vmem [resolvable:$true] %s285
          %291 = dma.hbm_to_vmem [thread:$0]  %s4, 3072, %s286, [#allocation9], 64, 64, 4
        $region24: #{tpu_custom_call.1} parent=11 // pred_fallthru
          _
        // Predicated region
        $region25: #{tpu_custom_call.1} parent=11 // pred_check
          %p292 = pneg %p178
        $region26: #{tpu_custom_call.1} parent=11 // pred_check_branch
          %294 = sbr.rel (%p292) target = $region28
        $region27: #{tpu_custom_call.1} parent=11 // pred_region
          _
        $region28: #{tpu_custom_call.1} parent=11 // pred_fallthru
          _
        // Predicated region
        $region29: #{tpu_custom_call.1} parent=11 // pred_check
          %p295 = pneg %p199
        $region30: #{tpu_custom_call.1} parent=11 // pred_check_branch
          %297 = sbr.rel (%p295) target = $region32
        $region31: #{tpu_custom_call.1} parent=11 // pred_region
          %s299 = ssub.s32 1024, 1024
          %300 = vsyncadd [#allocation9], %s299
          %s301 = sshll.u32 [#allocation10], 4
          %s302 = int_to_ptr.vmem [resolvable:$true] %s301
          %307 = dma.hbm_to_vmem [thread:$0]  %s6, 1024, %s302, [#allocation9], 64, 64, 4
        $region32: #{tpu_custom_call.1} parent=11 // pred_fallthru
          _
        // Predicated region
        $region33: #{tpu_custom_call.1} parent=11 // pred_check
          %p308 = pneg %p220
        $region34: #{tpu_custom_call.1} parent=11 // pred_check_branch
          %310 = sbr.rel (%p308) target = $region36
        $region35: #{tpu_custom_call.1} parent=11 // pred_region
          _
        $region36: #{tpu_custom_call.1} parent=11 // pred_fallthru
          _
      $region12: #{tpu_custom_call.1} parent=5 // pred_fallthru
        _
      %p311 = scmp.lt.s32.totalorder %s24, 6
      // Predicated region
      $region37: #{tpu_custom_call.1} parent=5 // pred_check
        %p312 = pneg %p311
      $region38: #{tpu_custom_call.1} parent=5 // pred_check_branch
        %314 = sbr.rel (%p312) target = $region40
      $region39: #{tpu_custom_call.1} parent=5 // pred_region
        // Predicated region
        $region41: #{tpu_custom_call.1} parent=39 // pred_check
          %p315 = pneg %p58
        $region42: #{tpu_custom_call.1} parent=39 // pred_check_branch
          %317 = sbr.rel (%p315) target = $region44
        $region43: #{tpu_custom_call.1} parent=39 // pred_region
          %s318 = sand.u32 %s48, 1
          %s319 = scalar_lea.sflag [#allocation3], %s318
          %s320 = sand.u32 %s48, 1
          %s321 = smul.addr %s320, 8
          %s322 = scalar_lea.vmem [#allocation2], %s321
          %s323 = smul.u32 2, %s32
          %s325 = ssub.s32 128, 128
          %326 = vsyncadd %s319, %s325
          %s327 = smul.addr %s31, 8
          %s328 = sadd.s32 %s323, %s327
          %s329 = smul.addr %s328, 64
          %s330 = scalar_lea.hbm %s0, %s329
          %s331 = sshll.u32 %s322, 4
          %s332 = int_to_ptr.vmem [resolvable:$true] %s331
          %337 = dma.hbm_to_vmem [thread:$0]  %s330, 128, %s332, %s319, 64, 64, 4
        $region44: #{tpu_custom_call.1} parent=39 // pred_fallthru
          _
        // Predicated region
        $region45: #{tpu_custom_call.1} parent=39 // pred_check
          %p338 = pneg %p88
        $region46: #{tpu_custom_call.1} parent=39 // pred_check_branch
          %340 = sbr.rel (%p338) target = $region48
        $region47: #{tpu_custom_call.1} parent=39 // pred_region
          %s341 = sand.u32 %s24, 1
          %s342 = scalar_lea.sflag [#allocation6], %s341
          %s343 = sand.u32 %s78, 1
          %s344 = smul.addr %s343, 8
          %s345 = scalar_lea.vmem [#allocation5], %s344
          %s346 = sadd.s32 %s32, 1
          %s347 = smul.u32 2, %s346
          %s349 = ssub.s32 128, 128
          %350 = vsyncadd %s342, %s349
          %s351 = smul.addr %s31, 8
          %s352 = sadd.s32 %s347, %s351
          %s353 = smul.addr %s352, 64
          %s354 = scalar_lea.hbm %s1, %s353
          %s355 = sshll.u32 %s345, 4
          %s356 = int_to_ptr.vmem [resolvable:$true] %s355
          %361 = dma.hbm_to_vmem [thread:$0]  %s354, 128, %s356, %s342, 64, 64, 4
        $region48: #{tpu_custom_call.1} parent=39 // pred_fallthru
          _
      $region40: #{tpu_custom_call.1} parent=5 // pred_fallthru
        _
      %p362 = scmp.le.s32.totalorder 1, %s24
      %p363 = scmp.lt.s32.totalorder %s24, 7
      %p364 = pnand %p362, %p363
      %p365 = pneg %p364
      // Predicated region
      $region49: #{tpu_custom_call.1} parent=5 // pred_check
        _
      $region50: #{tpu_custom_call.1} parent=5 // pred_check_branch
        %367 = sbr.rel (%p364) target = $region52
      $region51: #{tpu_custom_call.1} parent=5 // pred_region
        %s368 = ssub.s32 %s24, 1
        %s369 = sand.u32 %s51, 1
        %s370 = scalar_lea.sflag [#allocation3], %s369
        %s371 = sand.u32 %s51, 1
        %s372 = smul.addr %s371, 8
        %s373 = scalar_lea.vmem [#allocation2], %s372
        // Predicated region
        $region53: #{tpu_custom_call.1} parent=51 // pred_check
          %p374 = pneg %p64
        $region54: #{tpu_custom_call.1} parent=51 // pred_check_branch
          %376 = sbr.rel (%p374) target = $region56
        $region55: #{tpu_custom_call.1} parent=51 // pred_region
          %377 = dma.done %s370, 128
        $region56: #{tpu_custom_call.1} parent=51 // pred_fallthru
          _
        %s378 = sand.u32 %s29, 1
        %s379 = scalar_lea.sflag [#allocation6], %s378
        %s380 = sand.u32 %s81, 1
        %s381 = smul.addr %s380, 8
        %s382 = scalar_lea.vmem [#allocation5], %s381
        // Predicated region
        $region57: #{tpu_custom_call.1} parent=51 // pred_check
          %p383 = pneg %p94
        $region58: #{tpu_custom_call.1} parent=51 // pred_check_branch
          %385 = sbr.rel (%p383) target = $region60
        $region59: #{tpu_custom_call.1} parent=51 // pred_region
          %386 = dma.done %s379, 128
        $region60: #{tpu_custom_call.1} parent=51 // pred_fallthru
          _
        // Predicated region
        $region61: #{tpu_custom_call.1} parent=51 // pred_check
          %p387 = pneg %p115
        $region62: #{tpu_custom_call.1} parent=51 // pred_check_branch
          %389 = sbr.rel (%p387) target = $region64
        $region63: #{tpu_custom_call.1} parent=51 // pred_region
          %390 = dma.done [#allocation6], 3072
        $region64: #{tpu_custom_call.1} parent=51 // pred_fallthru
          _
        // Predicated region
        $region65: #{tpu_custom_call.1} parent=51 // pred_check
          %p391 = pneg %p157
        $region66: #{tpu_custom_call.1} parent=51 // pred_check_branch
          %393 = sbr.rel (%p391) target = $region68
        $region67: #{tpu_custom_call.1} parent=51 // pred_region
          %394 = dma.done [#allocation9], 3072
        $region68: #{tpu_custom_call.1} parent=51 // pred_fallthru
          _
        // Predicated region
        $region69: #{tpu_custom_call.1} parent=51 // pred_check
          %p395 = pneg %p199
        $region70: #{tpu_custom_call.1} parent=51 // pred_check_branch
          %397 = sbr.rel (%p395) target = $region72
        $region71: #{tpu_custom_call.1} parent=51 // pred_region
          %398 = dma.done [#allocation9], 1024
        $region72: #{tpu_custom_call.1} parent=51 // pred_fallthru
          _
        %s399 = sand.u32 %s51, 1
        %s400 = scalar_lea.sflag [#allocation3], %s399
        %s401 = sand.u32 %s51, 1
        %s402 = smul.addr %s401, 8
        %s403 = scalar_lea.vmem [#allocation2], %s402
        %p404 = pneg %p64
        %p405 = pneg %p61
        %s406 = sand.u32 %s29, 1
        %s407 = scalar_lea.sflag [#allocation6], %s406
        %s408 = sand.u32 %s81, 1
        %s409 = smul.addr %s408, 8
        %s410 = scalar_lea.vmem [#allocation5], %s409
        %p411 = pneg %p94
        %p412 = pneg %p91
        %p413 = pneg %p115
        %p414 = pneg %p112
        %p415 = pneg %p136
        %p416 = pneg %p133
        %p417 = pneg %p157
        %p418 = pneg %p154
        %p419 = pneg %p178
        %p420 = pneg %p175
        %p421 = pneg %p199
        %p422 = pneg %p196
        %p423 = pneg %p220
        %p424 = pneg %p217
        %p425 = pneg %p248
        %p426 = pneg %p245
        %s427 = sand.u32 %s235, 1
        %s428 = scalar_lea.sflag [#allocation4], %s427
        %s429 = sand.u32 %s235, 1
        %s430 = smul.addr %s429, 16
        %s431 = scalar_lea.vmem [#allocation11], %s430
        %s432 = smul.u32 2, %s34
        %s433 = sadd.s32 %s34, 1
        %s434 = smul.u32 2, %s433
        %s435 = smul.u32 2, %s34
        %v437 = vld [vmem:[%s373] sm:$0xf]
        %v438 = vld [vmem:[%s373 + $0x4] sm:$0xf]
        %v439 = vld [vmem:[%s382] sm:$0xf]
        %v440 = vld [vmem:[%s382 + $0x4] sm:$0xf]
        %v443 = vunpack.c.l.b16 %v437
        %v444 = vunpack.c.l.b16 %v438
        %v445 = vpack.c.b16 %v444, %v443
        %v448 = vunpack.c.l.b16 %v439
        %v449 = vunpack.c.l.b16 %v440
        %v450 = vpack.c.b16 %v449, %v448
        %v451 = vld [vmem:[#allocation7] sm:$0xf]
        %v452 = vld [vmem:[#allocation7 + $0x4] sm:$0xf]
        %v453 = vld [vmem:[#allocation7 + $0x8] sm:$0xf]
        %v454 = vld [vmem:[#allocation7 + $0xc] sm:$0xf]
        %v455 = vld [vmem:[#allocation7 + $0x10] sm:$0xf]
        %v456 = vld [vmem:[#allocation7 + $0x14] sm:$0xf]
        %v457 = vld [vmem:[#allocation7 + $0x18] sm:$0xf]
        %v458 = vld [vmem:[#allocation7 + $0x1c] sm:$0xf]
        %v459 = vld [vmem:[#allocation7 + $0x20] sm:$0xf]
        %v460 = vld [vmem:[#allocation7 + $0x24] sm:$0xf]
        %v461 = vld [vmem:[#allocation7 + $0x28] sm:$0xf]
        %v462 = vld [vmem:[#allocation7 + $0x2c] sm:$0xf]
        %v463 = vld [vmem:[#allocation7 + $0x30] sm:$0xf]
        %v464 = vld [vmem:[#allocation7 + $0x34] sm:$0xf]
        %v465 = vld [vmem:[#allocation7 + $0x38] sm:$0xf]
        %v466 = vld [vmem:[#allocation7 + $0x3c] sm:$0xf]
        %s467 = scalar_lea.vmem [#allocation7], 64
        %v468 = vld [vmem:[%s467] sm:$0xf]
        %v469 = vld [vmem:[%s467 + $0x4] sm:$0xf]
        %v470 = vld [vmem:[%s467 + $0x8] sm:$0xf]
        %v471 = vld [vmem:[%s467 + $0xc] sm:$0xf]
        %v472 = vld [vmem:[%s467 + $0x10] sm:$0xf]
        %v473 = vld [vmem:[%s467 + $0x14] sm:$0xf]
        %v474 = vld [vmem:[%s467 + $0x18] sm:$0xf]
        %v475 = vld [vmem:[%s467 + $0x1c] sm:$0xf]
        %v476 = vld [vmem:[%s467 + $0x20] sm:$0xf]
        %v477 = vld [vmem:[%s467 + $0x24] sm:$0xf]
        %v478 = vld [vmem:[%s467 + $0x28] sm:$0xf]
        %v479 = vld [vmem:[%s467 + $0x2c] sm:$0xf]
        %v480 = vld [vmem:[%s467 + $0x30] sm:$0xf]
        %v481 = vld [vmem:[%s467 + $0x34] sm:$0xf]
        %v482 = vld [vmem:[%s467 + $0x38] sm:$0xf]
        %v483 = vld [vmem:[%s467 + $0x3c] sm:$0xf]
        %vm484 = vcmask 1042432
        %v485 = vrot.slane %v445, 5
        %v486 = vrot.slane %v450, 5
        %v487 = vsel %vm484, %v485, %v486
        %v506 = vunpack.c.l.b16 %v468
        %v507 = vunpack.c.l.b16 %v469
        %v508 = vunpack.c.l.b16 %v470
        %v509 = vunpack.c.l.b16 %v471
        %v510 = vunpack.c.l.b16 %v472
        %v511 = vunpack.c.l.b16 %v473
        %v512 = vunpack.c.l.b16 %v474
        %v513 = vunpack.c.l.b16 %v475
        %v514 = vunpack.c.l.b16 %v476
        %v515 = vunpack.c.l.b16 %v477
        %v516 = vunpack.c.l.b16 %v478
        %v517 = vunpack.c.l.b16 %v479
        %v518 = vunpack.c.l.b16 %v480
        %v519 = vunpack.c.l.b16 %v481
        %v520 = vunpack.c.l.b16 %v482
        %v521 = vunpack.c.l.b16 %v483
        %v522 = vpack.c.b16 %v507, %v506
        %v523 = vpack.c.b16 %v509, %v508
        %v524 = vpack.c.b16 %v511, %v510
        %v525 = vpack.c.b16 %v513, %v512
        %v526 = vpack.c.b16 %v515, %v514
        %v527 = vpack.c.b16 %v517, %v516
        %v528 = vpack.c.b16 %v519, %v518
        %v529 = vpack.c.b16 %v521, %v520
        %538 = vmatprep.subr.bf16.mxu0 0
        %539 = vmatpush1.bf16.msra.mxu0 %v522
        %540 = vmatprep.subr.bf16.mxu0 0
        %541 = vmatpush1.bf16.msra.mxu0 %v523
        %542 = vmatprep.subr.bf16.mxu0 0
        %543 = vmatpush1.bf16.msra.mxu0 %v524
        %544 = vmatprep.subr.bf16.mxu0 0
        %545 = vmatpush1.bf16.msra.mxu0 %v525
        %546 = vmatprep.subr.bf16.mxu0 0
        %547 = vmatpush1.bf16.msra.mxu0 %v526
        %548 = vmatprep.subr.bf16.mxu0 0
        %549 = vmatpush1.bf16.msra.mxu0 %v527
        %550 = vmatprep.subr.bf16.mxu0 0
        %551 = vmatpush1.bf16.msra.mxu0 %v528
        %552 = vmatprep.subr.bf16.mxu0 0
        %553 = vmatpush1.bf16.msra.mxu0 %v529
        %554 = vmatprep.subr.bf16.mxu0 0
        %555 = vmatpush1.bf16.msra.mxu0 0
        %556 = vmatprep.subr.bf16.mxu0 0
        %557 = vmatpush1.bf16.msra.mxu0 0
        %558 = vmatprep.subr.bf16.mxu0 0
        %559 = vmatpush1.bf16.msra.mxu0 0
        %560 = vmatprep.subr.bf16.mxu0 0
        %561 = vmatpush1.bf16.msra.mxu0 0
        %562 = vmatprep.subr.bf16.mxu0 0
        %563 = vmatpush1.bf16.msra.mxu0 0
        %564 = vmatprep.subr.bf16.mxu0 0
        %565 = vmatpush1.bf16.msra.mxu0 0
        %566 = vmatprep.subr.bf16.mxu0 0
        %567 = vmatpush1.bf16.msra.mxu0 0
        %568 = vmatprep.subr.bf16.mxu0 0
        %569 = vmatpush1.bf16.msra.mxu0 0
        %570 = vmatprep.mubr.bf16.mxu0 0
        %571 = vmatmul.mubr.bf16.gmra.mrb[0].mxu0 %v487
        %v572 = vpop.f32.mrb[0].mxu0
        %v573 = vadd.f32 0.0, %v572
        %v574 = vpop.f32.mrb[0].mxu0
        %v575 = vpop.f32.mrb[0].mxu0
        %v576 = vadd.f32 0.0, %v575
        %v577 = vpop.f32.mrb[0].mxu0
        %578 = vmatprep.mubr.bf16.mxu0 0
        %579 = vmatmul.mubr.bf16.gmra.mrb[0].mxu0 %v486
        %v580 = vpop.f32.mrb[0].mxu0
        %v581 = vadd.f32 0.0, %v580
        %v582 = vpop.f32.mrb[0].mxu0
        %v583 = vpop.f32.mrb[0].mxu0
        %v584 = vpop.f32.mrb[0].mxu0
        %585 = vdwg.mxu0
        %vm586 = vcmask 1043456
        %v587 = vrot.slane %v445, 4
        %v588 = vrot.slane %v450, 4
        %v589 = vsel %vm586, %v587, %v588
        %v608 = vunpack.c.l.b16 %v451
        %v609 = vunpack.c.l.b16 %v452
        %v610 = vunpack.c.l.b16 %v453
        %v611 = vunpack.c.l.b16 %v454
        %v612 = vunpack.c.l.b16 %v455
        %v613 = vunpack.c.l.b16 %v456
        %v614 = vunpack.c.l.b16 %v457
        %v615 = vunpack.c.l.b16 %v458
        %v616 = vunpack.c.l.b16 %v459
        %v617 = vunpack.c.l.b16 %v460
        %v618 = vunpack.c.l.b16 %v461
        %v619 = vunpack.c.l.b16 %v462
        %v620 = vunpack.c.l.b16 %v463
        %v621 = vunpack.c.l.b16 %v464
        %v622 = vunpack.c.l.b16 %v465
        %v623 = vunpack.c.l.b16 %v466
        %v624 = vpack.c.b16 %v609, %v608
        %v625 = vpack.c.b16 %v611, %v610
        %v626 = vpack.c.b16 %v613, %v612
        %v627 = vpack.c.b16 %v615, %v614
        %v628 = vpack.c.b16 %v617, %v616
        %v629 = vpack.c.b16 %v619, %v618
        %v630 = vpack.c.b16 %v621, %v620
        %v631 = vpack.c.b16 %v623, %v622
        %640 = vmatprep.subr.bf16.mxu0 0
        %641 = vmatpush1.bf16.msra.mxu0 %v624
        %642 = vmatprep.subr.bf16.mxu0 0
        %643 = vmatpush1.bf16.msra.mxu0 %v625
        %644 = vmatprep.subr.bf16.mxu0 0
        %645 = vmatpush1.bf16.msra.mxu0 %v626
        %646 = vmatprep.subr.bf16.mxu0 0
        %647 = vmatpush1.bf16.msra.mxu0 %v627
        %648 = vmatprep.subr.bf16.mxu0 0
        %649 = vmatpush1.bf16.msra.mxu0 %v628
        %650 = vmatprep.subr.bf16.mxu0 0
        %651 = vmatpush1.bf16.msra.mxu0 %v629
        %652 = vmatprep.subr.bf16.mxu0 0
        %653 = vmatpush1.bf16.msra.mxu0 %v630
        %654 = vmatprep.subr.bf16.mxu0 0
        %655 = vmatpush1.bf16.msra.mxu0 %v631
        %656 = vmatprep.subr.bf16.mxu0 0
        %657 = vmatpush1.bf16.msra.mxu0 0
        %658 = vmatprep.subr.bf16.mxu0 0
        %659 = vmatpush1.bf16.msra.mxu0 0
        %660 = vmatprep.subr.bf16.mxu0 0
        %661 = vmatpush1.bf16.msra.mxu0 0
        %662 = vmatprep.subr.bf16.mxu0 0
        %663 = vmatpush1.bf16.msra.mxu0 0
        %664 = vmatprep.subr.bf16.mxu0 0
        %665 = vmatpush1.bf16.msra.mxu0 0
        %666 = vmatprep.subr.bf16.mxu0 0
        %667 = vmatpush1.bf16.msra.mxu0 0
        %668 = vmatprep.subr.bf16.mxu0 0
        %669 = vmatpush1.bf16.msra.mxu0 0
        %670 = vmatprep.subr.bf16.mxu0 0
        %671 = vmatpush1.bf16.msra.mxu0 0
        %672 = vmatprep.mubr.bf16.mxu0 0
        %673 = vmatmul.mubr.bf16.gmra.mrb[0].mxu0 %v589
        %v674 = vpop.f32.mrb[0].mxu0
        %v675 = vadd.f32 %v573, %v674
        %v676 = vpop.f32.mrb[0].mxu0
        %v677 = vpop.f32.mrb[0].mxu0
        %v678 = vadd.f32 %v576, %v677
        %v679 = vpop.f32.mrb[0].mxu0
        %680 = vmatprep.mubr.bf16.mxu0 0
        %681 = vmatmul.mubr.bf16.gmra.mrb[0].mxu0 %v588
        %v682 = vpop.f32.mrb[0].mxu0
        %v683 = vadd.f32 %v581, %v682
        %v684 = vpop.f32.mrb[0].mxu0
        %v685 = vpop.f32.mrb[0].mxu0
        %v686 = vpop.f32.mrb[0].mxu0
        %687 = vdwg.mxu0
        %s688 = scalar_lea.vmem [#allocation7], 128
        %v689 = vld [vmem:[%s688] sm:$0xf]
        %v690 = vld [vmem:[%s688 + $0x4] sm:$0xf]
        %v691 = vld [vmem:[%s688 + $0x8] sm:$0xf]
        %v692 = vld [vmem:[%s688 + $0xc] sm:$0xf]
        %v693 = vld [vmem:[%s688 + $0x10] sm:$0xf]
        %v694 = vld [vmem:[%s688 + $0x14] sm:$0xf]
        %v695 = vld [vmem:[%s688 + $0x18] sm:$0xf]
        %v696 = vld [vmem:[%s688 + $0x1c] sm:$0xf]
        %v697 = vld [vmem:[%s688 + $0x20] sm:$0xf]
        %v698 = vld [vmem:[%s688 + $0x24] sm:$0xf]
        %v699 = vld [vmem:[%s688 + $0x28] sm:$0xf]
        %v700 = vld [vmem:[%s688 + $0x2c] sm:$0xf]
        %v701 = vld [vmem:[%s688 + $0x30] sm:$0xf]
        %v702 = vld [vmem:[%s688 + $0x34] sm:$0xf]
        %v703 = vld [vmem:[%s688 + $0x38] sm:$0xf]
        %v704 = vld [vmem:[%s688 + $0x3c] sm:$0xf]
        %vm705 = vcmask 1041408
        %v706 = vrot.slane %v445, 6
        %v707 = vrot.slane %v450, 6
        %v708 = vsel %vm705, %v706, %v707
        %v727 = vunpack.c.l.b16 %v689
        %v728 = vunpack.c.l.b16 %v690
        %v729 = vunpack.c.l.b16 %v691
        %v730 = vunpack.c.l.b16 %v692
        %v731 = vunpack.c.l.b16 %v693
        %v732 = vunpack.c.l.b16 %v694
        %v733 = vunpack.c.l.b16 %v695
        %v734 = vunpack.c.l.b16 %v696
        %v735 = vunpack.c.l.b16 %v697
        %v736 = vunpack.c.l.b16 %v698
        %v737 = vunpack.c.l.b16 %v699
        %v738 = vunpack.c.l.b16 %v700
        %v739 = vunpack.c.l.b16 %v701
        %v740 = vunpack.c.l.b16 %v702
        %v741 = vunpack.c.l.b16 %v703
        %v742 = vunpack.c.l.b16 %v704
        %v743 = vpack.c.b16 %v728, %v727
        %v744 = vpack.c.b16 %v730, %v729
        %v745 = vpack.c.b16 %v732, %v731
        %v746 = vpack.c.b16 %v734, %v733
        %v747 = vpack.c.b16 %v736, %v735
        %v748 = vpack.c.b16 %v738, %v737
        %v749 = vpack.c.b16 %v740, %v739
        %v750 = vpack.c.b16 %v742, %v741
        %759 = vmatprep.subr.bf16.mxu0 0
        %760 = vmatpush1.bf16.msra.mxu0 %v743
        %761 = vmatprep.subr.bf16.mxu0 0
        %762 = vmatpush1.bf16.msra.mxu0 %v744
        %763 = vmatprep.subr.bf16.mxu0 0
        %764 = vmatpush1.bf16.msra.mxu0 %v745
        %765 = vmatprep.subr.bf16.mxu0 0
        %766 = vmatpush1.bf16.msra.mxu0 %v746
        %767 = vmatprep.subr.bf16.mxu0 0
        %768 = vmatpush1.bf16.msra.mxu0 %v747
        %769 = vmatprep.subr.bf16.mxu0 0
        %770 = vmatpush1.bf16.msra.mxu0 %v748
        %771 = vmatprep.subr.bf16.mxu0 0
        %772 = vmatpush1.bf16.msra.mxu0 %v749
        %773 = vmatprep.subr.bf16.mxu0 0
        %774 = vmatpush1.bf16.msra.mxu0 %v750
        %775 = vmatprep.subr.bf16.mxu0 0
        %776 = vmatpush1.bf16.msra.mxu0 0
        %777 = vmatprep.subr.bf16.mxu0 0
        %778 = vmatpush1.bf16.msra.mxu0 0
        %779 = vmatprep.subr.bf16.mxu0 0
        %780 = vmatpush1.bf16.msra.mxu0 0
        %781 = vmatprep.subr.bf16.mxu0 0
        %782 = vmatpush1.bf16.msra.mxu0 0
        %783 = vmatprep.subr.bf16.mxu0 0
        %784 = vmatpush1.bf16.msra.mxu0 0
        %785 = vmatprep.subr.bf16.mxu0 0
        %786 = vmatpush1.bf16.msra.mxu0 0
        %787 = vmatprep.subr.bf16.mxu0 0
        %788 = vmatpush1.bf16.msra.mxu0 0
        %789 = vmatprep.subr.bf16.mxu0 0
        %790 = vmatpush1.bf16.msra.mxu0 0
        %791 = vmatprep.mubr.bf16.mxu0 0
        %792 = vmatmul.mubr.bf16.gmra.mrb[0].mxu0 %v708
        %v793 = vpop.f32.mrb[0].mxu0
        %v794 = vadd.f32 0.0, %v793
        %v795 = vpop.f32.mrb[0].mxu0
        %v796 = vpop.f32.mrb[0].mxu0
        %v797 = vadd.f32 0.0, %v796
        %v798 = vpop.f32.mrb[0].mxu0
        %799 = vmatprep.mubr.bf16.mxu0 0
        %800 = vmatmul.mubr.bf16.gmra.mrb[0].mxu0 %v707
        %v801 = vpop.f32.mrb[0].mxu0
        %v802 = vadd.f32 0.0, %v801
        %v803 = vpop.f32.mrb[0].mxu0
        %v804 = vpop.f32.mrb[0].mxu0
        %v805 = vpop.f32.mrb[0].mxu0
        %806 = vdwg.mxu0
        %v807 = vadd.f32 %v675, %v794
        %v808 = vadd.f32 %v678, %v797
        %v809 = vadd.f32 %v683, %v802
        %v810 = vld [vmem:[%s3] sm:$0x1]
        %v812 = vlaneseq
        %v813 = vshrl.u32 %v812, 7
        %v814 = vsub.s32 0, %v813
        %v815 = vrot.slane %v810, %v814
        %v817 = vadd.f32 %v807, %v815
        %v818 = vadd.f32 %v808, %v815
        %v819 = vadd.f32 %v809, %v815
        %v820 = vmax.f32 %v817, 0.0
        %v821 = vmax.f32 %v818, 0.0
        %v822 = vmax.f32 %v819, 0.0
        %s823 = smul.u32 %s34, 16
        %s824 = ssub.s32 %s823, 4
        %v825 = vlaneseq
        %v826 = vshrl.u32 %v825, 7
        %v827 = vadd.s32 %v826, 8
        %v828 = vadd.s32 %v826, 16
        %v829 = vstv %s824
        %v830 = vadd.s32 %v829, %v826
        %v831 = vadd.s32 %v829, %v827
        %v832 = vadd.s32 %v829, %v828
        %vm833 = vcmp.lt.s32.totalorder %v830, 0
        %vm834 = vcmp.lt.s32.totalorder %v831, 0
        %vm835 = vcmp.lt.s32.totalorder %v832, 0
        %v836 = vsel %vm833, 1, 0
        %v837 = vsel %vm834, 1, 0
        %v838 = vsel %vm835, 1, 0
        %vm839 = vcmp.eq.s32.totalorder %v836, 1
        %vm840 = vcmp.eq.s32.totalorder %v837, 1
        %vm841 = vcmp.eq.s32.totalorder %v838, 1
        %v842 = vsel %vm839, 0.0, %v820
        %v843 = vsel %vm840, 0.0, %v821
        %v844 = vsel %vm841, 0.0, %v822
        %v845 = vpack.c.bf16 %v843, %v842
        %v846 = vpack.c.bf16 %v844, %v844
        %v847 = vld [vmem:[#allocation8] sm:$0xf]
        %v848 = vld [vmem:[#allocation8 + $0x4] sm:$0xf]
        %v849 = vld [vmem:[#allocation8 + $0x8] sm:$0xf]
        %v850 = vld [vmem:[#allocation8 + $0xc] sm:$0xf]
        %v851 = vld [vmem:[#allocation8 + $0x10] sm:$0xf]
        %v852 = vld [vmem:[#allocation8 + $0x14] sm:$0xf]
        %v853 = vld [vmem:[#allocation8 + $0x18] sm:$0xf]
        %v854 = vld [vmem:[#allocation8 + $0x1c] sm:$0xf]
        %v855 = vld [vmem:[#allocation8 + $0x20] sm:$0xf]
        %v856 = vld [vmem:[#allocation8 + $0x24] sm:$0xf]
        %v857 = vld [vmem:[#allocation8 + $0x28] sm:$0xf]
        %v858 = vld [vmem:[#allocation8 + $0x2c] sm:$0xf]
        %v859 = vld [vmem:[#allocation8 + $0x30] sm:$0xf]
        %v860 = vld [vmem:[#allocation8 + $0x34] sm:$0xf]
        %v861 = vld [vmem:[#allocation8 + $0x38] sm:$0xf]
        %v862 = vld [vmem:[#allocation8 + $0x3c] sm:$0xf]
        %s863 = scalar_lea.vmem [#allocation8], 64
        %v864 = vld [vmem:[%s863] sm:$0xf]
        %v865 = vld [vmem:[%s863 + $0x4] sm:$0xf]
        %v866 = vld [vmem:[%s863 + $0x8] sm:$0xf]
        %v867 = vld [vmem:[%s863 + $0xc] sm:$0xf]
        %v868 = vld [vmem:[%s863 + $0x10] sm:$0xf]
        %v869 = vld [vmem:[%s863 + $0x14] sm:$0xf]
        %v870 = vld [vmem:[%s863 + $0x18] sm:$0xf]
        %v871 = vld [vmem:[%s863 + $0x1c] sm:$0xf]
        %v872 = vld [vmem:[%s863 + $0x20] sm:$0xf]
        %v873 = vld [vmem:[%s863 + $0x24] sm:$0xf]
        %v874 = vld [vmem:[%s863 + $0x28] sm:$0xf]
        %v875 = vld [vmem:[%s863 + $0x2c] sm:$0xf]
        %v876 = vld [vmem:[%s863 + $0x30] sm:$0xf]
        %v877 = vld [vmem:[%s863 + $0x34] sm:$0xf]
        %v878 = vld [vmem:[%s863 + $0x38] sm:$0xf]
        %v879 = vld [vmem:[%s863 + $0x3c] sm:$0xf]
        %vm882 = vcmask 1046528
        %v883 = vrot.slane %v845, 1
        %v884 = vrot.slane %v846, 1
        %v885 = vsel %vm882, %v883, %v884
        %v903 = vunpack.c.l.b16 %v864
        %v904 = vunpack.c.l.b16 %v865
        %v905 = vunpack.c.l.b16 %v866
        %v906 = vunpack.c.l.b16 %v867
        %v907 = vunpack.c.l.b16 %v868
        %v908 = vunpack.c.l.b16 %v869
        %v909 = vunpack.c.l.b16 %v870
        %v910 = vunpack.c.l.b16 %v871
        %v911 = vunpack.c.l.b16 %v872
        %v912 = vunpack.c.l.b16 %v873
        %v913 = vunpack.c.l.b16 %v874
        %v914 = vunpack.c.l.b16 %v875
        %v915 = vunpack.c.l.b16 %v876
        %v916 = vunpack.c.l.b16 %v877
        %v917 = vunpack.c.l.b16 %v878
        %v918 = vunpack.c.l.b16 %v879
        %v919 = vpack.c.b16 %v904, %v903
        %v920 = vpack.c.b16 %v906, %v905
        %v921 = vpack.c.b16 %v908, %v907
        %v922 = vpack.c.b16 %v910, %v909
        %v923 = vpack.c.b16 %v912, %v911
        %v924 = vpack.c.b16 %v914, %v913
        %v925 = vpack.c.b16 %v916, %v915
        %v926 = vpack.c.b16 %v918, %v917
        %935 = vmatprep.subr.bf16.mxu0 0
        %936 = vmatpush1.bf16.msra.mxu0 %v919
        %937 = vmatprep.subr.bf16.mxu0 0
        %938 = vmatpush1.bf16.msra.mxu0 %v920
        %939 = vmatprep.subr.bf16.mxu0 0
        %940 = vmatpush1.bf16.msra.mxu0 %v921
        %941 = vmatprep.subr.bf16.mxu0 0
        %942 = vmatpush1.bf16.msra.mxu0 %v922
        %943 = vmatprep.subr.bf16.mxu0 0
        %944 = vmatpush1.bf16.msra.mxu0 %v923
        %945 = vmatprep.subr.bf16.mxu0 0
        %946 = vmatpush1.bf16.msra.mxu0 %v924
        %947 = vmatprep.subr.bf16.mxu0 0
        %948 = vmatpush1.bf16.msra.mxu0 %v925
        %949 = vmatprep.subr.bf16.mxu0 0
        %950 = vmatpush1.bf16.msra.mxu0 %v926
        %951 = vmatprep.subr.bf16.mxu0 0
        %952 = vmatpush1.bf16.msra.mxu0 0
        %953 = vmatprep.subr.bf16.mxu0 0
        %954 = vmatpush1.bf16.msra.mxu0 0
        %955 = vmatprep.subr.bf16.mxu0 0
        %956 = vmatpush1.bf16.msra.mxu0 0
        %957 = vmatprep.subr.bf16.mxu0 0
        %958 = vmatpush1.bf16.msra.mxu0 0
        %959 = vmatprep.subr.bf16.mxu0 0
        %960 = vmatpush1.bf16.msra.mxu0 0
        %961 = vmatprep.subr.bf16.mxu0 0
        %962 = vmatpush1.bf16.msra.mxu0 0
        %963 = vmatprep.subr.bf16.mxu0 0
        %964 = vmatpush1.bf16.msra.mxu0 0
        %965 = vmatprep.subr.bf16.mxu0 0
        %966 = vmatpush1.bf16.msra.mxu0 0
        %967 = vmatprep.mubr.bf16.mxu0 0
        %968 = vmatmul.mubr.bf16.gmra.mrb[0].mxu0 %v885
        %v969 = vpop.f32.mrb[0].mxu0
        %v970 = vadd.f32 0.0, %v969
        %v971 = vpop.f32.mrb[0].mxu0
        %v972 = vpop.f32.mrb[0].mxu0
        %v973 = vadd.f32 0.0, %v972
        %v974 = vpop.f32.mrb[0].mxu0
        %975 = vdwg.mxu0
        %v992 = vunpack.c.l.b16 %v847
        %v993 = vunpack.c.l.b16 %v848
        %v994 = vunpack.c.l.b16 %v849
        %v995 = vunpack.c.l.b16 %v850
        %v996 = vunpack.c.l.b16 %v851
        %v997 = vunpack.c.l.b16 %v852
        %v998 = vunpack.c.l.b16 %v853
        %v999 = vunpack.c.l.b16 %v854
        %v1000 = vunpack.c.l.b16 %v855
        %v1001 = vunpack.c.l.b16 %v856
        %v1002 = vunpack.c.l.b16 %v857
        %v1003 = vunpack.c.l.b16 %v858
        %v1004 = vunpack.c.l.b16 %v859
        %v1005 = vunpack.c.l.b16 %v860
        %v1006 = vunpack.c.l.b16 %v861
        %v1007 = vunpack.c.l.b16 %v862
        %v1008 = vpack.c.b16 %v993, %v992
        %v1009 = vpack.c.b16 %v995, %v994
        %v1010 = vpack.c.b16 %v997, %v996
        %v1011 = vpack.c.b16 %v999, %v998
        %v1012 = vpack.c.b16 %v1001, %v1000
        %v1013 = vpack.c.b16 %v1003, %v1002
        %v1014 = vpack.c.b16 %v1005, %v1004
        %v1015 = vpack.c.b16 %v1007, %v1006
        %1024 = vmatprep.subr.bf16.mxu0 0
        %1025 = vmatpush1.bf16.msra.mxu0 %v1008
        %1026 = vmatprep.subr.bf16.mxu0 0
        %1027 = vmatpush1.bf16.msra.mxu0 %v1009
        %1028 = vmatprep.subr.bf16.mxu0 0
        %1029 = vmatpush1.bf16.msra.mxu0 %v1010
        %1030 = vmatprep.subr.bf16.mxu0 0
        %1031 = vmatpush1.bf16.msra.mxu0 %v1011
        %1032 = vmatprep.subr.bf16.mxu0 0
        %1033 = vmatpush1.bf16.msra.mxu0 %v1012
        %1034 = vmatprep.subr.bf16.mxu0 0
        %1035 = vmatpush1.bf16.msra.mxu0 %v1013
        %1036 = vmatprep.subr.bf16.mxu0 0
        %1037 = vmatpush1.bf16.msra.mxu0 %v1014
        %1038 = vmatprep.subr.bf16.mxu0 0
        %1039 = vmatpush1.bf16.msra.mxu0 %v1015
        %1040 = vmatprep.subr.bf16.mxu0 0
        %1041 = vmatpush1.bf16.msra.mxu0 0
        %1042 = vmatprep.subr.bf16.mxu0 0
        %1043 = vmatpush1.bf16.msra.mxu0 0
        %1044 = vmatprep.subr.bf16.mxu0 0
        %1045 = vmatpush1.bf16.msra.mxu0 0
        %1046 = vmatprep.subr.bf16.mxu0 0
        %1047 = vmatpush1.bf16.msra.mxu0 0
        %1048 = vmatprep.subr.bf16.mxu0 0
        %1049 = vmatpush1.bf16.msra.mxu0 0
        %1050 = vmatprep.subr.bf16.mxu0 0
        %1051 = vmatpush1.bf16.msra.mxu0 0
        %1052 = vmatprep.subr.bf16.mxu0 0
        %1053 = vmatpush1.bf16.msra.mxu0 0
        %1054 = vmatprep.subr.bf16.mxu0 0
        %1055 = vmatpush1.bf16.msra.mxu0 0
        %1056 = vmatprep.mubr.bf16.mxu0 0
        %1057 = vmatmul.mubr.bf16.gmra.mrb[0].mxu0 %v845
        %v1058 = vpop.f32.mrb[0].mxu0
        %v1059 = vadd.f32 %v970, %v1058
        %v1060 = vpop.f32.mrb[0].mxu0
        %v1061 = vpop.f32.mrb[0].mxu0
        %v1062 = vadd.f32 %v973, %v1061
        %v1063 = vpop.f32.mrb[0].mxu0
        %1064 = vdwg.mxu0
        %s1065 = scalar_lea.vmem [#allocation8], 128
        %v1066 = vld [vmem:[%s1065] sm:$0xf]
        %v1067 = vld [vmem:[%s1065 + $0x4] sm:$0xf]
        %v1068 = vld [vmem:[%s1065 + $0x8] sm:$0xf]
        %v1069 = vld [vmem:[%s1065 + $0xc] sm:$0xf]
        %v1070 = vld [vmem:[%s1065 + $0x10] sm:$0xf]
        %v1071 = vld [vmem:[%s1065 + $0x14] sm:$0xf]
        %v1072 = vld [vmem:[%s1065 + $0x18] sm:$0xf]
        %v1073 = vld [vmem:[%s1065 + $0x1c] sm:$0xf]
        %v1074 = vld [vmem:[%s1065 + $0x20] sm:$0xf]
        %v1075 = vld [vmem:[%s1065 + $0x24] sm:$0xf]
        %v1076 = vld [vmem:[%s1065 + $0x28] sm:$0xf]
        %v1077 = vld [vmem:[%s1065 + $0x2c] sm:$0xf]
        %v1078 = vld [vmem:[%s1065 + $0x30] sm:$0xf]
        %v1079 = vld [vmem:[%s1065 + $0x34] sm:$0xf]
        %v1080 = vld [vmem:[%s1065 + $0x38] sm:$0xf]
        %v1081 = vld [vmem:[%s1065 + $0x3c] sm:$0xf]
        %vm1082 = vcmask 1045504
        %v1083 = vrot.slane %v845, 2
        %v1084 = vrot.slane %v846, 2
        %v1085 = vsel %vm1082, %v1083, %v1084
        %v1103 = vunpack.c.l.b16 %v1066
        %v1104 = vunpack.c.l.b16 %v1067
        %v1105 = vunpack.c.l.b16 %v1068
        %v1106 = vunpack.c.l.b16 %v1069
        %v1107 = vunpack.c.l.b16 %v1070
        %v1108 = vunpack.c.l.b16 %v1071
        %v1109 = vunpack.c.l.b16 %v1072
        %v1110 = vunpack.c.l.b16 %v1073
        %v1111 = vunpack.c.l.b16 %v1074
        %v1112 = vunpack.c.l.b16 %v1075
        %v1113 = vunpack.c.l.b16 %v1076
        %v1114 = vunpack.c.l.b16 %v1077
        %v1115 = vunpack.c.l.b16 %v1078
        %v1116 = vunpack.c.l.b16 %v1079
        %v1117 = vunpack.c.l.b16 %v1080
        %v1118 = vunpack.c.l.b16 %v1081
        %v1119 = vpack.c.b16 %v1104, %v1103
        %v1120 = vpack.c.b16 %v1106, %v1105
        %v1121 = vpack.c.b16 %v1108, %v1107
        %v1122 = vpack.c.b16 %v1110, %v1109
        %v1123 = vpack.c.b16 %v1112, %v1111
        %v1124 = vpack.c.b16 %v1114, %v1113
        %v1125 = vpack.c.b16 %v1116, %v1115
        %v1126 = vpack.c.b16 %v1118, %v1117
        %1135 = vmatprep.subr.bf16.mxu0 0
        %1136 = vmatpush1.bf16.msra.mxu0 %v1119
        %1137 = vmatprep.subr.bf16.mxu0 0
        %1138 = vmatpush1.bf16.msra.mxu0 %v1120
        %1139 = vmatprep.subr.bf16.mxu0 0
        %1140 = vmatpush1.bf16.msra.mxu0 %v1121
        %1141 = vmatprep.subr.bf16.mxu0 0
        %1142 = vmatpush1.bf16.msra.mxu0 %v1122
        %1143 = vmatprep.subr.bf16.mxu0 0
        %1144 = vmatpush1.bf16.msra.mxu0 %v1123
        %1145 = vmatprep.subr.bf16.mxu0 0
        %1146 = vmatpush1.bf16.msra.mxu0 %v1124
        %1147 = vmatprep.subr.bf16.mxu0 0
        %1148 = vmatpush1.bf16.msra.mxu0 %v1125
        %1149 = vmatprep.subr.bf16.mxu0 0
        %1150 = vmatpush1.bf16.msra.mxu0 %v1126
        %1151 = vmatprep.subr.bf16.mxu0 0
        %1152 = vmatpush1.bf16.msra.mxu0 0
        %1153 = vmatprep.subr.bf16.mxu0 0
        %1154 = vmatpush1.bf16.msra.mxu0 0
        %1155 = vmatprep.subr.bf16.mxu0 0
        %1156 = vmatpush1.bf16.msra.mxu0 0
        %1157 = vmatprep.subr.bf16.mxu0 0
        %1158 = vmatpush1.bf16.msra.mxu0 0
        %1159 = vmatprep.subr.bf16.mxu0 0
        %1160 = vmatpush1.bf16.msra.mxu0 0
        %1161 = vmatprep.subr.bf16.mxu0 0
        %1162 = vmatpush1.bf16.msra.mxu0 0
        %1163 = vmatprep.subr.bf16.mxu0 0
        %1164 = vmatpush1.bf16.msra.mxu0 0
        %1165 = vmatprep.subr.bf16.mxu0 0
        %1166 = vmatpush1.bf16.msra.mxu0 0
        %1167 = vmatprep.mubr.bf16.mxu0 0
        %1168 = vmatmul.mubr.bf16.gmra.mrb[0].mxu0 %v1085
        %v1169 = vpop.f32.mrb[0].mxu0
        %v1170 = vadd.f32 0.0, %v1169
        %v1171 = vpop.f32.mrb[0].mxu0
        %v1172 = vpop.f32.mrb[0].mxu0
        %v1173 = vadd.f32 0.0, %v1172
        %v1174 = vpop.f32.mrb[0].mxu0
        %1175 = vdwg.mxu0
        %v1176 = vadd.f32 %v1059, %v1170
        %v1177 = vadd.f32 %v1062, %v1173
        %v1178 = vld [vmem:[%s5] sm:$0x1]
        %v1180 = vlaneseq
        %v1181 = vshrl.u32 %v1180, 7
        %v1182 = vsub.s32 0, %v1181
        %v1183 = vrot.slane %v1178, %v1182
        %v1185 = vadd.f32 %v1176, %v1183
        %v1186 = vadd.f32 %v1177, %v1183
        %v1187 = vmax.f32 %v1185, 0.0
        %v1188 = vmax.f32 %v1186, 0.0
        %v1189 = vld [vmem:[#allocation10] sm:$0xf]
        %v1190 = vld [vmem:[#allocation10 + $0x4] sm:$0xf]
        %v1191 = vld [vmem:[#allocation10 + $0x8] sm:$0xf]
        %v1192 = vld [vmem:[#allocation10 + $0xc] sm:$0xf]
        %v1193 = vld [vmem:[#allocation10 + $0x10] sm:$0xf]
        %v1194 = vld [vmem:[#allocation10 + $0x14] sm:$0xf]
        %v1195 = vld [vmem:[#allocation10 + $0x18] sm:$0xf]
        %v1196 = vld [vmem:[#allocation10 + $0x1c] sm:$0xf]
        %v1197 = vld [vmem:[#allocation10 + $0x20] sm:$0xf]
        %v1198 = vld [vmem:[#allocation10 + $0x24] sm:$0xf]
        %v1199 = vld [vmem:[#allocation10 + $0x28] sm:$0xf]
        %v1200 = vld [vmem:[#allocation10 + $0x2c] sm:$0xf]
        %v1201 = vld [vmem:[#allocation10 + $0x30] sm:$0xf]
        %v1202 = vld [vmem:[#allocation10 + $0x34] sm:$0xf]
        %v1203 = vld [vmem:[#allocation10 + $0x38] sm:$0xf]
        %v1204 = vld [vmem:[#allocation10 + $0x3c] sm:$0xf]
        %v1205 = vld [vmem:[%s7] sm:$0x1]
        %v1207 = vlaneseq
        %v1208 = vshrl.u32 %v1207, 7
        %v1209 = vsub.s32 0, %v1208
        %v1210 = vrot.slane %v1205, %v1209
        %v1229 = vunpack.c.l.b16 %v1189
        %v1230 = vunpack.c.l.b16 %v1190
        %v1231 = vunpack.c.l.b16 %v1191
        %v1232 = vunpack.c.l.b16 %v1192
        %v1233 = vunpack.c.l.b16 %v1193
        %v1234 = vunpack.c.l.b16 %v1194
        %v1235 = vunpack.c.l.b16 %v1195
        %v1236 = vunpack.c.l.b16 %v1196
        %v1237 = vunpack.c.l.b16 %v1197
        %v1238 = vunpack.c.l.b16 %v1198
        %v1239 = vunpack.c.l.b16 %v1199
        %v1240 = vunpack.c.l.b16 %v1200
        %v1241 = vunpack.c.l.b16 %v1201
        %v1242 = vunpack.c.l.b16 %v1202
        %v1243 = vunpack.c.l.b16 %v1203
        %v1244 = vunpack.c.l.b16 %v1204
        %v1245 = vpack.c.b16 %v1230, %v1229
        %v1246 = vpack.c.b16 %v1232, %v1231
        %v1247 = vpack.c.b16 %v1234, %v1233
        %v1248 = vpack.c.b16 %v1236, %v1235
        %v1249 = vpack.c.b16 %v1238, %v1237
        %v1250 = vpack.c.b16 %v1240, %v1239
        %v1251 = vpack.c.b16 %v1242, %v1241
        %v1252 = vpack.c.b16 %v1244, %v1243
        %1261 = vmatprep.subr.bf16.mxu0 0
        %1262 = vmatpush1.bf16.msra.mxu0 %v1245
        %1263 = vmatprep.subr.bf16.mxu0 0
        %1264 = vmatpush1.bf16.msra.mxu0 %v1246
        %1265 = vmatprep.subr.bf16.mxu0 0
        %1266 = vmatpush1.bf16.msra.mxu0 %v1247
        %1267 = vmatprep.subr.bf16.mxu0 0
        %1268 = vmatpush1.bf16.msra.mxu0 %v1248
        %1269 = vmatprep.subr.bf16.mxu0 0
        %1270 = vmatpush1.bf16.msra.mxu0 %v1249
        %1271 = vmatprep.subr.bf16.mxu0 0
        %1272 = vmatpush1.bf16.msra.mxu0 %v1250
        %1273 = vmatprep.subr.bf16.mxu0 0
        %1274 = vmatpush1.bf16.msra.mxu0 %v1251
        %1275 = vmatprep.subr.bf16.mxu0 0
        %1276 = vmatpush1.bf16.msra.mxu0 %v1252
        %1277 = vmatprep.subr.bf16.mxu0 0
        %1278 = vmatpush1.bf16.msra.mxu0 0
        %1279 = vmatprep.subr.bf16.mxu0 0
        %1280 = vmatpush1.bf16.msra.mxu0 0
        %1281 = vmatprep.subr.bf16.mxu0 0
        %1282 = vmatpush1.bf16.msra.mxu0 0
        %1283 = vmatprep.subr.bf16.mxu0 0
        %1284 = vmatpush1.bf16.msra.mxu0 0
        %1285 = vmatprep.subr.bf16.mxu0 0
        %1286 = vmatpush1.bf16.msra.mxu0 0
        %1287 = vmatprep.subr.bf16.mxu0 0
        %1288 = vmatpush1.bf16.msra.mxu0 0
        %1289 = vmatprep.subr.bf16.mxu0 0
        %1290 = vmatpush1.bf16.msra.mxu0 0
        %1291 = vmatprep.subr.bf16.mxu0 0
        %1292 = vmatpush1.bf16.msra.mxu0 0
        %1293 = vmatprep.mubr.bf16.mxu0 0
        %1294 = vmatmul.mubr.bf16.gmra.mrb[0].mxu0 %v450
        %v1295 = vpop.f32.mrb[0].mxu0
        %v1296 = vadd.f32 %v1210, %v1295
        %v1297 = vpop.f32.mrb[0].mxu0
        %v1298 = vpop.f32.mrb[0].mxu0
        %v1299 = vadd.f32 %v1210, %v1298
        %v1300 = vpop.f32.mrb[0].mxu0
        %1301 = vdwg.mxu0
        %v1302 = vadd.f32 %v1187, %v1296
        %v1303 = vadd.f32 %v1188, %v1299
        %v1304 = vmax.f32 %v1302, 0.0
        %v1305 = vmax.f32 %v1303, 0.0
        %1306 = vst [vmem:[%s431] sm:$0xff] %v1304
        %1307 = vst [vmem:[%s431 + $0x8] sm:$0xff] %v1305
        %s1308 = sand.u32 %s235, 1
        %s1309 = scalar_lea.sflag [#allocation4], %s1308
        %s1310 = sand.u32 %s235, 1
        %s1311 = smul.addr %s1310, 16
        %s1312 = scalar_lea.vmem [#allocation11], %s1311
        // Predicated region
        $region73: #{tpu_custom_call.1} parent=51 // pred_check
          %p1313 = pneg %p245
        $region74: #{tpu_custom_call.1} parent=51 // pred_check_branch
          %1315 = sbr.rel (%p1313) target = $region76
        $region75: #{tpu_custom_call.1} parent=51 // pred_region
          %s1316 = smul.u32 2, %s34
          %s1318 = ssub.s32 256, 256
          %1319 = vsyncadd %s1309, %s1318
          %s1320 = smul.addr %s33, 6
          %s1321 = sadd.s32 %s1316, %s1320
          %s1322 = smul.addr %s1321, 128
          %s1323 = scalar_lea.hbm %s8, %s1322
          %s1324 = sshll.u32 %s1312, 4
          %s1325 = int_to_ptr.vmem [resolvable:$true] %s1324
          %1330 = dma.vmem_to_hbm [thread:$0]  %s1325, 256, %s1323, %s1309, 128, 128, 8
        $region76: #{tpu_custom_call.1} parent=51 // pred_fallthru
          _
      $region52: #{tpu_custom_call.1} parent=5 // pred_fallthru
        _
      %p1331 = scmp.le.s32.totalorder 2, %s24
      // Predicated region
      $region77: #{tpu_custom_call.1} parent=5 // pred_check
        %p1332 = pneg %p1331
      $region78: #{tpu_custom_call.1} parent=5 // pred_check_branch
        %1334 = sbr.rel (%p1332) target = $region80
      $region79: #{tpu_custom_call.1} parent=5 // pred_region
        %s1335 = ssub.s32 %s24, 2
        // Predicated region
        $region81: #{tpu_custom_call.1} parent=79 // pred_check
          %p1336 = pneg %p251
        $region82: #{tpu_custom_call.1} parent=79 // pred_check_branch
          %1338 = sbr.rel (%p1336) target = $region84
        $region83: #{tpu_custom_call.1} parent=79 // pred_region
          %s1339 = sand.u32 %s236, 1
          %s1340 = scalar_lea.sflag [#allocation4], %s1339
          %s1341 = sand.u32 %s236, 1
          %s1342 = smul.addr %s1341, 16
          %s1343 = scalar_lea.vmem [#allocation11], %s1342
          %1344 = dma.done %s1340, 256
        $region84: #{tpu_custom_call.1} parent=79 // pred_fallthru
          _
      $region80: #{tpu_custom_call.1} parent=5 // pred_fallthru
        _
    $region6: #{tpu_custom_call.1} parent=1 // loop_footer
      %s28 = sadd.s32 1, %s24
    $region7: #{tpu_custom_call.1} parent=1 // loop_footer_branch
      %23 = sbr.rel target = $region3
    $region8: #{tpu_custom_call.1} parent=1 // loop_exit
      _
    %1345 = vsyncpa [#allocation3], 1
    %s1346 = scalar_lea.sflag [#allocation3], 1
    %1347 = vsyncpa %s1346, 1
    %1348 = vsyncpa [#allocation6], 1
    %s1349 = scalar_lea.sflag [#allocation6], 1
    %1350 = vsyncpa %s1349, 1
    %1351 = vsyncpa [#allocation9], 1
    %1352 = vsyncpa [#allocation4], 1
    %s1353 = scalar_lea.sflag [#allocation4], 1
    %1354 = vsyncpa %s1353, 1

</llo_original>
